<compile_context>
chip_gen: v5e
topology: v5e:2x2
jax: 0.10.0
libtpu: 0.0.40
codegen_flags: <defaults>
</compile_context>

<pallas_src>
import jax
import jax.numpy as jnp
from jax.experimental import pallas as pl
from jax.experimental.pallas import tpu as pltpu

LAYER_DIMS = [768, 512, 256, 128, 64, 16, 8, 2]
MAX_TB = 1024  # max batch-tile rows per grid step


def _round_up(n, m):
    return ((n + m - 1) // m) * m


def _pick_tb(B):
    """Adaptive batch tile: small batches -> one small tile; larger batches ->
    >=2 grid steps (v7x megacore) capped at MAX_TB, rows a multiple of 16."""
    if B <= 16:
        return _round_up(max(B, 1), 8)
    half = (B + 1) // 2
    return min(MAX_TB, _round_up(half, 16))


def _mlp_kernel(x_ref,
                w1, b1, w2, b2, w3, b3, w4, b4, w5, b5, w6, b6,
                wd, bd,
                o_ref):
    # Cast the f32 input tile to bf16 in-kernel (hidden under MXU compute).
    h = x_ref[...].astype(jnp.bfloat16)

    # Hidden layers: bf16 matmul inputs, fp32 accumulation, bias/ReLU in fp32.
    for w_ref, b_ref in ((w1, b1), (w2, b2), (w3, b3),
                         (w4, b4), (w5, b5), (w6, b6)):
        acc = jnp.dot(h, w_ref[...], preferred_element_type=jnp.float32)
        h = jnp.maximum(acc + b_ref[...], 0.0).astype(jnp.bfloat16)

    # Final 8 -> 2 layer collapsed into a logit-difference column:
    #   d = l0 - l1 = h @ (w7[:,0] - w7[:,1]) + (b7[0] - b7[1])
    d = jnp.dot(h.astype(jnp.float32), wd[...],
                preferred_element_type=jnp.float32) + bd[...]      # (tb, 1)

    # Stable 2-class softmax:  p1 = 1 / (1 + exp(d)),  p0 = 1 - p1,
    # evaluated via exp(-|d|) so large |d| never overflows.
    e = jnp.exp(-jnp.abs(d))                                        # (0, 1]
    inv = pl.reciprocal(1.0 + e, approx=True)
    p1 = jnp.where(d >= 0.0, e * inv, inv)
    p0 = 1.0 - p1
    col = jax.lax.broadcasted_iota(jnp.int32, (p1.shape[0], 2), 1)
    o_ref[...] = jnp.where(col == 0, p0, p1).astype(o_ref.dtype)


def mlp_forward(x, params, *, tb=None):
    """x: (B, 768) float32.  params: list of 7 (W(in,out) bf16, b(1,out) f32)."""
    B, D = x.shape
    assert D == LAYER_DIMS[0]
    if tb is None:
        tb = _pick_tb(B)
    grid = pl.cdiv(B, tb)

    # Collapse the output layer into a logit-difference column (kept in f32;
    # this tiny (8,1) dot costs nothing and avoids bf16 re-rounding).
    w7, b7 = params[-1]
    w7f = w7.astype(jnp.float32)
    wd = w7f[:, 0:1] - w7f[:, 1:2]                                  # (8, 1) f32
    bd = (b7[:, 0:1] - b7[:, 1:2]).astype(jnp.float32)              # (1, 1) f32

    # x / out stream over the batch grid; weights & biases use constant index
    # maps so they are fetched once and stay resident in VMEM.
    flat = [x]
    in_specs = [pl.BlockSpec((tb, LAYER_DIMS[0]), lambda i: (i, 0))]
    for w, b in params[:-1]:
        flat += [w, b]
        in_specs.append(pl.BlockSpec(w.shape, lambda i: (0, 0)))
        in_specs.append(pl.BlockSpec(b.shape, lambda i: (0, 0)))
    flat += [wd, bd]
    in_specs.append(pl.BlockSpec(wd.shape, lambda i: (0, 0)))
    in_specs.append(pl.BlockSpec(bd.shape, lambda i: (0, 0)))

    out_spec = pl.BlockSpec((tb, LAYER_DIMS[-1]), lambda i: (i, 0))

    flops = 2 * B * sum(LAYER_DIMS[i] * LAYER_DIMS[i + 1]
                        for i in range(len(LAYER_DIMS) - 1))
    bytes_accessed = (x.size * 4
                      + sum(w.size * 2 + b.size * 4 for w, b in params)
                      + B * LAYER_DIMS[-1] * 4)

    # Large tiles: raise scoped VMEM a bit (v5e's 16 MiB default is tight at
    # tb=1024 with double-buffered f32 x tiles).  Well under v7x's 64 MiB.
    vmem_limit = 48 * 1024 * 1024 if tb >= 512 else None

    out = pl.pallas_call(
        _mlp_kernel,
        out_shape=jax.ShapeDtypeStruct((B, LAYER_DIMS[-1]), jnp.float32),
        grid=(grid,),
        in_specs=in_specs,
        out_specs=out_spec,
        compiler_params=pltpu.CompilerParams(
            dimension_semantics=("parallel",),
            vmem_limit_bytes=vmem_limit),
        cost_estimate=pl.CostEstimate(
            flops=flops, transcendentals=B, bytes_accessed=bytes_accessed),
    )(*flat)
    return out


def init_params(key):
    """Deterministic init mimicking nn.Linear's uniform(-1/sqrt(fan_in), +)."""
    params = []
    for i in range(len(LAYER_DIMS) - 1):
        fan_in, fan_out = LAYER_DIMS[i], LAYER_DIMS[i + 1]
        key, kw, kb = jax.random.split(key, 3)
        bound = 1.0 / jnp.sqrt(jnp.float32(fan_in))
        w = jax.random.uniform(kw, (fan_in, fan_out), jnp.float32, -bound, bound)
        b = jax.random.uniform(kb, (1, fan_out), jnp.float32, -bound, bound)
        params.append((w.astype(jnp.bfloat16), b))
    return params


def reference_forward(x, params):
    """Pure-JAX reference mirroring the kernel's bf16-matmul / f32-accum math."""
    h = x.astype(jnp.bfloat16)
    for w, b in params[:-1]:
        acc = jnp.dot(h, w, preferred_element_type=jnp.float32) + b
        h = jnp.maximum(acc, 0.0).astype(jnp.bfloat16)
    w, b = params[-1]
    logits = jnp.dot(h, w, preferred_element_type=jnp.float32) + b
    return jax.nn.softmax(logits, axis=1)


if __name__ == "__main__":
    key = jax.random.PRNGKey(0)
    key, kx = jax.random.split(key)
    params = init_params(key)

    # B=8: single small tile.  B=64: two grid steps (exercises the batch grid
    # and the "parallel" axis that shards across v7x's two TensorCores).
    for B in (8, 64):
        kx, kb = jax.random.split(kx)
        x = jax.random.normal(kb, (B, 768), jnp.float32)

        out = mlp_forward(x, params)
        jax.block_until_ready(out)

        ref = reference_forward(x, params)
        assert out.shape == (B, 2)
        assert jnp.allclose(out, ref, atol=1e-2, rtol=1e-2)
        assert jnp.allclose(jnp.sum(out, axis=1), 1.0, atol=1e-5)

    print("KERNEL_OK")
</pallas_src>

<mosaic_0001>
module attributes {stable_mosaic.version = 11 : i64} {
  func.func @_mlp_kernel(%arg0: i32, %arg1: memref<8x768xf32, #tpu.memory_space<vmem>>, %arg2: memref<768x512xbf16, #tpu.memory_space<vmem>>, %arg3: memref<1x512xf32, #tpu.memory_space<vmem>>, %arg4: memref<512x256xbf16, #tpu.memory_space<vmem>>, %arg5: memref<1x256xf32, #tpu.memory_space<vmem>>, %arg6: memref<256x128xbf16, #tpu.memory_space<vmem>>, %arg7: memref<1x128xf32, #tpu.memory_space<vmem>>, %arg8: memref<128x64xbf16, #tpu.memory_space<vmem>>, %arg9: memref<1x64xf32, #tpu.memory_space<vmem>>, %arg10: memref<64x16xbf16, #tpu.memory_space<vmem>>, %arg11: memref<1x16xf32, #tpu.memory_space<vmem>>, %arg12: memref<16x8xbf16, #tpu.memory_space<vmem>>, %arg13: memref<1x8xf32, #tpu.memory_space<vmem>>, %arg14: memref<8x1xf32, #tpu.memory_space<vmem>>, %arg15: memref<1x1xf32, #tpu.memory_space<vmem>>, %arg16: memref<8x2xf32, #tpu.memory_space<vmem>>) attributes {dimension_semantics = [#tpu.dimension_semantics<parallel>], iteration_bounds = array<i64: 1>, scalar_prefetch = 0 : i64, scratch_operands = 0 : i64, tpu.core_type = #tpu.core_type<tc>, window_params = [{transform_indices = @transform_0, window_bounds = array<i64: 8, 768>}, {pipeline_mode = #tpu.pipeline_mode<synchronous>, transform_indices = @transform_1, window_bounds = array<i64: 768, 512>}, {pipeline_mode = #tpu.pipeline_mode<synchronous>, transform_indices = @transform_2, window_bounds = array<i64: 1, 512>}, {pipeline_mode = #tpu.pipeline_mode<synchronous>, transform_indices = @transform_3, window_bounds = array<i64: 512, 256>}, {pipeline_mode = #tpu.pipeline_mode<synchronous>, transform_indices = @transform_4, window_bounds = array<i64: 1, 256>}, {pipeline_mode = #tpu.pipeline_mode<synchronous>, transform_indices = @transform_5, window_bounds = array<i64: 256, 128>}, {pipeline_mode = #tpu.pipeline_mode<synchronous>, transform_indices = @transform_6, window_bounds = array<i64: 1, 128>}, {pipeline_mode = #tpu.pipeline_mode<synchronous>, transform_indices = @transform_7, window_bounds = array<i64: 128, 64>}, {pipeline_mode = #tpu.pipeline_mode<synchronous>, transform_indices = @transform_8, window_bounds = array<i64: 1, 64>}, {pipeline_mode = #tpu.pipeline_mode<synchronous>, transform_indices = @transform_9, window_bounds = array<i64: 64, 16>}, {pipeline_mode = #tpu.pipeline_mode<synchronous>, transform_indices = @transform_10, window_bounds = array<i64: 1, 16>}, {pipeline_mode = #tpu.pipeline_mode<synchronous>, transform_indices = @transform_11, window_bounds = array<i64: 16, 8>}, {pipeline_mode = #tpu.pipeline_mode<synchronous>, transform_indices = @transform_12, window_bounds = array<i64: 1, 8>}, {pipeline_mode = #tpu.pipeline_mode<synchronous>, transform_indices = @transform_13, window_bounds = array<i64: 8, 1>}, {pipeline_mode = #tpu.pipeline_mode<synchronous>, transform_indices = @transform_14, window_bounds = array<i64: 1, 1>}, {transform_indices = @transform_15, window_bounds = array<i64: 8, 2>}]} {
    %c0 = arith.constant 0 : index
    %c0_0 = arith.constant 0 : index
    %0 = vector.load %arg1[%c0, %c0_0] : memref<8x768xf32, #tpu.memory_space<vmem>>, vector<8x768xf32>
    %1 = arith.truncf %0 : vector<8x768xf32> to vector<8x768xbf16>
    %c0_1 = arith.constant 0 : index
    %c0_2 = arith.constant 0 : index
    %2 = vector.load %arg2[%c0_1, %c0_2] : memref<768x512xbf16, #tpu.memory_space<vmem>>, vector<768x512xbf16>
    %cst = arith.constant dense<0.000000e+00> : vector<8x512xf32>
    %3 = tpu.matmul %1, %2, %cst {dimension_numbers = #tpu.dot_dimension_numbers<[1], [0], [0], [1], [0, 0, 1, 1], [], []>} : vector<8x768xbf16>, vector<768x512xbf16>, vector<8x512xf32> -> vector<8x512xf32>
    %c0_3 = arith.constant 0 : index
    %c0_4 = arith.constant 0 : index
    %4 = vector.load %arg3[%c0_3, %c0_4] : memref<1x512xf32, #tpu.memory_space<vmem>>, vector<1x512xf32>
    %5 = vector.broadcast %4 : vector<1x512xf32> to vector<8x512xf32>
    %6 = arith.addf %3, %5 : vector<8x512xf32>
    %cst_5 = arith.constant 0.000000e+00 : f32
    %7 = vector.broadcast %cst_5 : f32 to vector<8x512xf32>
    %8 = arith.maximumf %6, %7 : vector<8x512xf32>
    %9 = arith.truncf %8 : vector<8x512xf32> to vector<8x512xbf16>
    %c0_6 = arith.constant 0 : index
    %c0_7 = arith.constant 0 : index
    %10 = vector.load %arg4[%c0_6, %c0_7] : memref<512x256xbf16, #tpu.memory_space<vmem>>, vector<512x256xbf16>
    %cst_8 = arith.constant dense<0.000000e+00> : vector<8x256xf32>
    %11 = tpu.matmul %9, %10, %cst_8 {dimension_numbers = #tpu.dot_dimension_numbers<[1], [0], [0], [1], [0, 0, 1, 1], [], []>} : vector<8x512xbf16>, vector<512x256xbf16>, vector<8x256xf32> -> vector<8x256xf32>
    %c0_9 = arith.constant 0 : index
    %c0_10 = arith.constant 0 : index
    %12 = vector.load %arg5[%c0_9, %c0_10] : memref<1x256xf32, #tpu.memory_space<vmem>>, vector<1x256xf32>
    %13 = vector.broadcast %12 : vector<1x256xf32> to vector<8x256xf32>
    %14 = arith.addf %11, %13 : vector<8x256xf32>
    %cst_11 = arith.constant 0.000000e+00 : f32
    %15 = vector.broadcast %cst_11 : f32 to vector<8x256xf32>
    %16 = arith.maximumf %14, %15 : vector<8x256xf32>
    %17 = arith.truncf %16 : vector<8x256xf32> to vector<8x256xbf16>
    %c0_12 = arith.constant 0 : index
    %c0_13 = arith.constant 0 : index
    %18 = vector.load %arg6[%c0_12, %c0_13] : memref<256x128xbf16, #tpu.memory_space<vmem>>, vector<256x128xbf16>
    %cst_14 = arith.constant dense<0.000000e+00> : vector<8x128xf32>
    %19 = tpu.matmul %17, %18, %cst_14 {dimension_numbers = #tpu.dot_dimension_numbers<[1], [0], [0], [1], [0, 0, 1, 1], [], []>} : vector<8x256xbf16>, vector<256x128xbf16>, vector<8x128xf32> -> vector<8x128xf32>
    %c0_15 = arith.constant 0 : index
    %c0_16 = arith.constant 0 : index
    %20 = vector.load %arg7[%c0_15, %c0_16] : memref<1x128xf32, #tpu.memory_space<vmem>>, vector<1x128xf32>
    %21 = vector.broadcast %20 : vector<1x128xf32> to vector<8x128xf32>
    %22 = arith.addf %19, %21 : vector<8x128xf32>
    %cst_17 = arith.constant 0.000000e+00 : f32
    %23 = vector.broadcast %cst_17 : f32 to vector<8x128xf32>
    %24 = arith.maximumf %22, %23 : vector<8x128xf32>
    %25 = arith.truncf %24 : vector<8x128xf32> to vector<8x128xbf16>
    %c0_18 = arith.constant 0 : index
    %c0_19 = arith.constant 0 : index
    %26 = vector.load %arg8[%c0_18, %c0_19] : memref<128x64xbf16, #tpu.memory_space<vmem>>, vector<128x64xbf16>
    %cst_20 = arith.constant dense<0.000000e+00> : vector<8x64xf32>
    %27 = tpu.matmul %25, %26, %cst_20 {dimension_numbers = #tpu.dot_dimension_numbers<[1], [0], [0], [1], [0, 0, 1, 1], [], []>} : vector<8x128xbf16>, vector<128x64xbf16>, vector<8x64xf32> -> vector<8x64xf32>
    %c0_21 = arith.constant 0 : index
    %c0_22 = arith.constant 0 : index
    %28 = vector.load %arg9[%c0_21, %c0_22] : memref<1x64xf32, #tpu.memory_space<vmem>>, vector<1x64xf32>
    %29 = vector.broadcast %28 : vector<1x64xf32> to vector<8x64xf32>
    %30 = arith.addf %27, %29 : vector<8x64xf32>
    %cst_23 = arith.constant 0.000000e+00 : f32
    %31 = vector.broadcast %cst_23 : f32 to vector<8x64xf32>
    %32 = arith.maximumf %30, %31 : vector<8x64xf32>
    %33 = arith.truncf %32 : vector<8x64xf32> to vector<8x64xbf16>
    %c0_24 = arith.constant 0 : index
    %c0_25 = arith.constant 0 : index
    %34 = vector.load %arg10[%c0_24, %c0_25] : memref<64x16xbf16, #tpu.memory_space<vmem>>, vector<64x16xbf16>
    %cst_26 = arith.constant dense<0.000000e+00> : vector<8x16xf32>
    %35 = tpu.matmul %33, %34, %cst_26 {dimension_numbers = #tpu.dot_dimension_numbers<[1], [0], [0], [1], [0, 0, 1, 1], [], []>} : vector<8x64xbf16>, vector<64x16xbf16>, vector<8x16xf32> -> vector<8x16xf32>
    %c0_27 = arith.constant 0 : index
    %c0_28 = arith.constant 0 : index
    %36 = vector.load %arg11[%c0_27, %c0_28] : memref<1x16xf32, #tpu.memory_space<vmem>>, vector<1x16xf32>
    %37 = vector.broadcast %36 : vector<1x16xf32> to vector<8x16xf32>
    %38 = arith.addf %35, %37 : vector<8x16xf32>
    %cst_29 = arith.constant 0.000000e+00 : f32
    %39 = vector.broadcast %cst_29 : f32 to vector<8x16xf32>
    %40 = arith.maximumf %38, %39 : vector<8x16xf32>
    %41 = arith.truncf %40 : vector<8x16xf32> to vector<8x16xbf16>
    %c0_30 = arith.constant 0 : index
    %c0_31 = arith.constant 0 : index
    %42 = vector.load %arg12[%c0_30, %c0_31] : memref<16x8xbf16, #tpu.memory_space<vmem>>, vector<16x8xbf16>
    %cst_32 = arith.constant dense<0.000000e+00> : vector<8x8xf32>
    %43 = tpu.matmul %41, %42, %cst_32 {dimension_numbers = #tpu.dot_dimension_numbers<[1], [0], [0], [1], [0, 0, 1, 1], [], []>} : vector<8x16xbf16>, vector<16x8xbf16>, vector<8x8xf32> -> vector<8x8xf32>
    %c0_33 = arith.constant 0 : index
    %c0_34 = arith.constant 0 : index
    %44 = vector.load %arg13[%c0_33, %c0_34] : memref<1x8xf32, #tpu.memory_space<vmem>>, vector<1x8xf32>
    %45 = vector.broadcast %44 : vector<1x8xf32> to vector<8x8xf32>
    %46 = arith.addf %43, %45 : vector<8x8xf32>
    %cst_35 = arith.constant 0.000000e+00 : f32
    %47 = vector.broadcast %cst_35 : f32 to vector<8x8xf32>
    %48 = arith.maximumf %46, %47 : vector<8x8xf32>
    %49 = arith.truncf %48 : vector<8x8xf32> to vector<8x8xbf16>
    %50 = arith.extf %49 : vector<8x8xbf16> to vector<8x8xf32>
    %c0_36 = arith.constant 0 : index
    %c0_37 = arith.constant 0 : index
    %51 = vector.load %arg14[%c0_36, %c0_37] : memref<8x1xf32, #tpu.memory_space<vmem>>, vector<8x1xf32>
    %cst_38 = arith.constant dense<0.000000e+00> : vector<8x1xf32>
    %52 = tpu.matmul %50, %51, %cst_38 {dimension_numbers = #tpu.dot_dimension_numbers<[1], [0], [0], [1], [0, 0, 1, 1], [], []>} : vector<8x8xf32>, vector<8x1xf32>, vector<8x1xf32> -> vector<8x1xf32>
    %c0_39 = arith.constant 0 : index
    %c0_40 = arith.constant 0 : index
    %53 = vector.load %arg15[%c0_39, %c0_40] : memref<1x1xf32, #tpu.memory_space<vmem>>, vector<1x1xf32>
    %54 = vector.broadcast %53 : vector<1x1xf32> to vector<8x1xf32>
    %55 = arith.addf %52, %54 : vector<8x1xf32>
    %56 = math.absf %55 : vector<8x1xf32>
    %cst_41 = arith.constant 0.000000e+00 : f32
    %57 = vector.broadcast %cst_41 : f32 to vector<8x1xf32>
    %58 = arith.subf %57, %56 : vector<8x1xf32>
    %59 = math.exp %58 : vector<8x1xf32>
    %cst_42 = arith.constant 1.000000e+00 : f32
    %60 = vector.broadcast %cst_42 : f32 to vector<8x1xf32>
    %61 = arith.addf %60, %59 : vector<8x1xf32>
    %62 = tpu.reciprocal %61 {approx = true} : vector<8x1xf32> -> vector<8x1xf32>
    %cst_43 = arith.constant 0.000000e+00 : f32
    %63 = vector.broadcast %cst_43 : f32 to vector<8x1xf32>
    %64 = arith.cmpf oge, %55, %63 : vector<8x1xf32>
    %65 = arith.mulf %59, %62 : vector<8x1xf32>
    %66 = arith.select %64, %65, %62 : vector<8x1xi1>, vector<8x1xf32>
    %cst_44 = arith.constant 1.000000e+00 : f32
    %67 = vector.broadcast %cst_44 : f32 to vector<8x1xf32>
    %68 = arith.subf %67, %66 : vector<8x1xf32>
    %69 = tpu.iota {dimensions = array<i32: 1>} : vector<8x2xi32>
    %c0_i32 = arith.constant 0 : i32
    %70 = vector.broadcast %c0_i32 : i32 to vector<8x2xi32>
    %71 = arith.cmpi eq, %69, %70 : vector<8x2xi32>
    %72 = vector.shape_cast %68 : vector<8x1xf32> to vector<8x1xf32>
    %73 = vector.broadcast %72 : vector<8x1xf32> to vector<8x2xf32>
    %74 = vector.shape_cast %66 : vector<8x1xf32> to vector<8x1xf32>
    %75 = vector.broadcast %74 : vector<8x1xf32> to vector<8x2xf32>
    %76 = arith.select %71, %73, %75 : vector<8x2xi1>, vector<8x2xf32>
    %c0_45 = arith.constant 0 : index
    %c0_46 = arith.constant 0 : index
    %77 = vector.load %arg16[%c0_45, %c0_46] : memref<8x2xf32, #tpu.memory_space<vmem>>, vector<8x2xf32>
    tpu.vector_store %arg16[%c0_45, %c0_46], %76 {strides = array<i32>} : memref<8x2xf32, #tpu.memory_space<vmem>>, vector<8x2xf32>,
    return
  }
  func.func @transform_0(%arg0: i32) -> (i32, i32) {
    %c0_i32 = arith.constant 0 : i32
    %c0_i32_0 = arith.constant 0 : i32
    return %arg0, %c0_i32 : i32, i32
  }
  func.func @transform_1(%arg0: i32) -> (i32, i32) {
    %c0_i32 = arith.constant 0 : i32
    %c0_i32_0 = arith.constant 0 : i32
    %c0_i32_1 = arith.constant 0 : i32
    return %c0_i32, %c0_i32_0 : i32, i32
  }
  func.func @transform_2(%arg0: i32) -> (i32, i32) {
    %c0_i32 = arith.constant 0 : i32
    %c0_i32_0 = arith.constant 0 : i32
    %c0_i32_1 = arith.constant 0 : i32
    return %c0_i32, %c0_i32_0 : i32, i32
  }
  func.func @transform_3(%arg0: i32) -> (i32, i32) {
    %c0_i32 = arith.constant 0 : i32
    %c0_i32_0 = arith.constant 0 : i32
    %c0_i32_1 = arith.constant 0 : i32
    return %c0_i32, %c0_i32_0 : i32, i32
  }
  func.func @transform_4(%arg0: i32) -> (i32, i32) {
    %c0_i32 = arith.constant 0 : i32
    %c0_i32_0 = arith.constant 0 : i32
    %c0_i32_1 = arith.constant 0 : i32
    return %c0_i32, %c0_i32_0 : i32, i32
  }
  func.func @transform_5(%arg0: i32) -> (i32, i32) {
    %c0_i32 = arith.constant 0 : i32
    %c0_i32_0 = arith.constant 0 : i32
    %c0_i32_1 = arith.constant 0 : i32
    return %c0_i32, %c0_i32_0 : i32, i32
  }
  func.func @transform_6(%arg0: i32) -> (i32, i32) {
    %c0_i32 = arith.constant 0 : i32
    %c0_i32_0 = arith.constant 0 : i32
    %c0_i32_1 = arith.constant 0 : i32
    return %c0_i32, %c0_i32_0 : i32, i32
  }
  func.func @transform_7(%arg0: i32) -> (i32, i32) {
    %c0_i32 = arith.constant 0 : i32
    %c0_i32_0 = arith.constant 0 : i32
    %c0_i32_1 = arith.constant 0 : i32
    return %c0_i32, %c0_i32_0 : i32, i32
  }
  func.func @transform_8(%arg0: i32) -> (i32, i32) {
    %c0_i32 = arith.constant 0 : i32
    %c0_i32_0 = arith.constant 0 : i32
    %c0_i32_1 = arith.constant 0 : i32
    return %c0_i32, %c0_i32_0 : i32, i32
  }
  func.func @transform_9(%arg0: i32) -> (i32, i32) {
    %c0_i32 = arith.constant 0 : i32
    %c0_i32_0 = arith.constant 0 : i32
    %c0_i32_1 = arith.constant 0 : i32
    return %c0_i32, %c0_i32_0 : i32, i32
  }
  func.func @transform_10(%arg0: i32) -> (i32, i32) {
    %c0_i32 = arith.constant 0 : i32
    %c0_i32_0 = arith.constant 0 : i32
    %c0_i32_1 = arith.constant 0 : i32
    return %c0_i32, %c0_i32_0 : i32, i32
  }
  func.func @transform_11(%arg0: i32) -> (i32, i32) {
    %c0_i32 = arith.constant 0 : i32
    %c0_i32_0 = arith.constant 0 : i32
    %c0_i32_1 = arith.constant 0 : i32
    return %c0_i32, %c0_i32_0 : i32, i32
  }
  func.func @transform_12(%arg0: i32) -> (i32, i32) {
    %c0_i32 = arith.constant 0 : i32
    %c0_i32_0 = arith.constant 0 : i32
    %c0_i32_1 = arith.constant 0 : i32
    return %c0_i32, %c0_i32_0 : i32, i32
  }
  func.func @transform_13(%arg0: i32) -> (i32, i32) {
    %c0_i32 = arith.constant 0 : i32
    %c0_i32_0 = arith.constant 0 : i32
    %c0_i32_1 = arith.constant 0 : i32
    return %c0_i32, %c0_i32_0 : i32, i32
  }
  func.func @transform_14(%arg0: i32) -> (i32, i32) {
    %c0_i32 = arith.constant 0 : i32
    %c0_i32_0 = arith.constant 0 : i32
    %c0_i32_1 = arith.constant 0 : i32
    return %c0_i32, %c0_i32_0 : i32, i32
  }
  func.func @transform_15(%arg0: i32) -> (i32, i32) {
    %c0_i32 = arith.constant 0 : i32
    %c0_i32_0 = arith.constant 0 : i32
    return %arg0, %c0_i32 : i32, i32
  }
}

</mosaic_0001>

<llo_original>
// kernel: tpu_custom_call.1
$region0: #{tpu_custom_call.1}
  #allocation0 [shape = 'u32[]', space=smem, size = 0x4, offset = 0x4, fixed_abs, tag = 'smem constant byte address 0x4 - core index']
  #allocation1 [shape = 'u32[72,128]{1,0:T(1,128)}', space=vmem, size = 0x9000, scoped, tag = 'internal scratch']
  #allocation2 [shape = 'f32[1,1]{1,0:T(1,128)S(1)}', space=vmem, size = 0x200, scoped, tag = 'scoped memory for tpu_custom_call.1']
  %s0 = inlined_call_operand.hbm [shape: f32[8,768], index: 0, kind: input, shape index: {}]
  %s1 = inlined_call_operand.hbm [shape: bf16[768,512], index: 1, kind: input, shape index: {}]
  %s2 = inlined_call_operand.vmem [shape: f32[1,512], index: 2, kind: input, shape index: {}]
  %s3 = inlined_call_operand.hbm [shape: bf16[512,256], index: 3, kind: input, shape index: {}]
  %s4 = inlined_call_operand.hbm [shape: f32[1,256], index: 4, kind: input, shape index: {}]
  %s5 = inlined_call_operand.vmem [shape: bf16[256,128], index: 5, kind: input, shape index: {}]
  %s6 = inlined_call_operand.hbm [shape: f32[1,128], index: 6, kind: input, shape index: {}]
  %s7 = inlined_call_operand.vmem [shape: bf16[128,64], index: 7, kind: input, shape index: {}]
  %s8 = inlined_call_operand.hbm [shape: f32[1,64], index: 8, kind: input, shape index: {}]
  %s9 = inlined_call_operand.vmem [shape: bf16[64,16], index: 9, kind: input, shape index: {}]
  %s10 = inlined_call_operand.hbm [shape: f32[1,16], index: 10, kind: input, shape index: {}]
  %s11 = inlined_call_operand.vmem [shape: bf16[16,8], index: 11, kind: input, shape index: {}]
  %s12 = inlined_call_operand.vmem [shape: f32[1,8], index: 12, kind: input, shape index: {}]
  %s13 = inlined_call_operand.vmem [shape: f32[8,1], index: 13, kind: input, shape index: {}]
  %s14 = inlined_call_operand.<no memory space> [shape: f32[1,1], index: 14, kind: input, shape index: {}]
  %s15 = inlined_call_operand.vmem [shape: f32[8,2], index: 15, kind: output, shape index: {}]
  %s16 = sld [smem:[#allocation0]]
  $region98: #{tpu_custom_call.1} parent=0
    _
  %s18 = ssub.s32 1, %s16
  %s19 = scalar_select 0, %s18, %s16
  %v20 = vstv %s14
  %21 = vst [vmem:[#allocation2] sm:$0x1] %v20
  $region1: #{tpu_custom_call.1} parent=0
    #allocation3 [shape = 'u8[24576]{0}', space=vmem, size = 0x6000, scoped, tag = 'input window, operand 0, single buffered']
    #allocation4 [shape = 's32[1]{0}', space=sflag, size = 0x4, scoped, tag = 'scoped memory for tpu_custom_call.1']
    #allocation5 [shape = 'u8[786432]{0}', space=vmem, size = 0xc0000, scoped, tag = 'input window, operand 1, single buffered']
    #allocation6 [shape = 's32[1]{0}', space=sflag, size = 0x4, scoped, tag = 'scoped memory for tpu_custom_call.1']
    #allocation7 [shape = 'u8[262144]{0}', space=vmem, size = 0x40000, scoped, tag = 'input window, operand 3, single buffered']
    #allocation8 [shape = 'u8[1024]{0}', space=vmem, size = 0x400, scoped, tag = 'input window, operand 4, single buffered']
    #allocation9 [shape = 's32[1]{0}', space=sflag, size = 0x4, scoped, tag = 'scoped memory for tpu_custom_call.1']
    #allocation10 [shape = 'u8[512]{0}', space=vmem, size = 0x400, scoped, tag = 'input window, operand 6, single buffered']
    #allocation11 [shape = 'u8[512]{0}', space=vmem, size = 0x400, scoped, tag = 'input window, operand 8, single buffered']
    #allocation12 [shape = 's32[1]{0}', space=sflag, size = 0x4, scoped, tag = 'scoped memory for tpu_custom_call.1']
    #allocation13 [shape = 'u8[512]{0}', space=vmem, size = 0x400, scoped, tag = 'input window, operand 10, single buffered']
    %22 = vsyncpa [#allocation4], 0
    %23 = vsyncpa [#allocation6], 0
    %24 = vsyncpa [#allocation9], 0
    %25 = vsyncpa [#allocation12], 0
    // Predicated region
    $region2: #{tpu_custom_call.1} parent=1 // pred_check
      _
    $region3: #{tpu_custom_call.1} parent=1 // pred_check_branch
      %27 = sbr.rel (0) target = $region5
    $region4: #{tpu_custom_call.1} parent=1 // pred_region
      %29 = vsyncadd [#allocation4], 0
      %s31 = sshll.u32 %s0, 4
      %s32 = int_to_ptr.hbm [resolvable:$true] %s31
      %s33 = sshll.u32 [#allocation3], 4
      %s34 = int_to_ptr.vmem [resolvable:$true] %s33
      %36 = dma.hbm_to_vmem [thread:$0]  %s32, 768, %s34, [#allocation4]
    $region5: #{tpu_custom_call.1} parent=1 // pred_fallthru
      _
    // Predicated region
    $region6: #{tpu_custom_call.1} parent=1 // pred_check
      _
    $region7: #{tpu_custom_call.1} parent=1 // pred_check_branch
      %38 = sbr.rel (0) target = $region9
    $region8: #{tpu_custom_call.1} parent=1 // pred_region
      %40 = vsyncadd [#allocation6], 0
      %s41 = sshll.u32 %s1, 4
      %s42 = int_to_ptr.hbm [resolvable:$true] %s41
      %s43 = sshll.u32 [#allocation5], 4
      %s44 = int_to_ptr.vmem [resolvable:$true] %s43
      %49 = dma.hbm_to_vmem [thread:$0]  %s42, 24576, %s44, [#allocation6], 256, 256, 16
    $region9: #{tpu_custom_call.1} parent=1 // pred_fallthru
      _
    // Predicated region
    $region10: #{tpu_custom_call.1} parent=1 // pred_check
      _
    $region11: #{tpu_custom_call.1} parent=1 // pred_check_branch
      %51 = sbr.rel (0) target = $region13
    $region12: #{tpu_custom_call.1} parent=1 // pred_region
      _
    $region13: #{tpu_custom_call.1} parent=1 // pred_fallthru
      _
    // Predicated region
    $region14: #{tpu_custom_call.1} parent=1 // pred_check
      _
    $region15: #{tpu_custom_call.1} parent=1 // pred_check_branch
      %53 = sbr.rel (0) target = $region17
    $region16: #{tpu_custom_call.1} parent=1 // pred_region
      %55 = vsyncadd [#allocation6], 0
      %s56 = sshll.u32 %s3, 4
      %s57 = int_to_ptr.hbm [resolvable:$true] %s56
      %s58 = sshll.u32 [#allocation7], 4
      %s59 = int_to_ptr.vmem [resolvable:$true] %s58
      %64 = dma.hbm_to_vmem [thread:$0]  %s57, 8192, %s59, [#allocation6], 128, 128, 8
    $region17: #{tpu_custom_call.1} parent=1 // pred_fallthru
      _
    // Predicated region
    $region18: #{tpu_custom_call.1} parent=1 // pred_check
      _
    $region19: #{tpu_custom_call.1} parent=1 // pred_check_branch
      %66 = sbr.rel (0) target = $region21
    $region20: #{tpu_custom_call.1} parent=1 // pred_region
      %68 = vsyncadd [#allocation9], 0
      %s70 = sshll.u32 %s4, 4
      %s71 = int_to_ptr.hbm [resolvable:$true] %s70
      %s72 = sshll.u32 [#allocation8], 4
      %s73 = int_to_ptr.vmem [resolvable:$true] %s72
      %75 = dma.hbm_to_vmem [thread:$0]  %s71, 32, %s73, [#allocation9]
    $region21: #{tpu_custom_call.1} parent=1 // pred_fallthru
      _
    // Predicated region
    $region22: #{tpu_custom_call.1} parent=1 // pred_check
      _
    $region23: #{tpu_custom_call.1} parent=1 // pred_check_branch
      %77 = sbr.rel (0) target = $region25
    $region24: #{tpu_custom_call.1} parent=1 // pred_region
      _
    $region25: #{tpu_custom_call.1} parent=1 // pred_fallthru
      _
    // Predicated region
    $region26: #{tpu_custom_call.1} parent=1 // pred_check
      _
    $region27: #{tpu_custom_call.1} parent=1 // pred_check_branch
      %79 = sbr.rel (0) target = $region29
    $region28: #{tpu_custom_call.1} parent=1 // pred_region
      %81 = vsyncadd [#allocation9], 0
      %s83 = sshll.u32 %s6, 4
      %s84 = int_to_ptr.hbm [resolvable:$true] %s83
      %s85 = sshll.u32 [#allocation10], 4
      %s86 = int_to_ptr.vmem [resolvable:$true] %s85
      %88 = dma.hbm_to_vmem [thread:$0]  %s84, 16, %s86, [#allocation9]
    $region29: #{tpu_custom_call.1} parent=1 // pred_fallthru
      _
    // Predicated region
    $region30: #{tpu_custom_call.1} parent=1 // pred_check
      _
    $region31: #{tpu_custom_call.1} parent=1 // pred_check_branch
      %90 = sbr.rel (0) target = $region33
    $region32: #{tpu_custom_call.1} parent=1 // pred_region
      _
    $region33: #{tpu_custom_call.1} parent=1 // pred_fallthru
      _
    // Predicated region
    $region34: #{tpu_custom_call.1} parent=1 // pred_check
      _
    $region35: #{tpu_custom_call.1} parent=1 // pred_check_branch
      %92 = sbr.rel (0) target = $region37
    $region36: #{tpu_custom_call.1} parent=1 // pred_region
      %94 = vsyncadd [#allocation12], 0
      %s96 = sshll.u32 %s8, 4
      %s97 = int_to_ptr.hbm [resolvable:$true] %s96
      %s98 = sshll.u32 [#allocation11], 4
      %s99 = int_to_ptr.vmem [resolvable:$true] %s98
      %101 = dma.hbm_to_vmem [thread:$0]  %s97, 16, %s99, [#allocation12]
    $region37: #{tpu_custom_call.1} parent=1 // pred_fallthru
      _
    // Predicated region
    $region38: #{tpu_custom_call.1} parent=1 // pred_check
      _
    $region39: #{tpu_custom_call.1} parent=1 // pred_check_branch
      %103 = sbr.rel (0) target = $region41
    $region40: #{tpu_custom_call.1} parent=1 // pred_region
      _
    $region41: #{tpu_custom_call.1} parent=1 // pred_fallthru
      _
    // Predicated region
    $region42: #{tpu_custom_call.1} parent=1 // pred_check
      _
    $region43: #{tpu_custom_call.1} parent=1 // pred_check_branch
      %105 = sbr.rel (0) target = $region45
    $region44: #{tpu_custom_call.1} parent=1 // pred_region
      %107 = vsyncadd [#allocation12], 0
      %s109 = sshll.u32 %s10, 4
      %s110 = int_to_ptr.hbm [resolvable:$true] %s109
      %s111 = sshll.u32 [#allocation13], 4
      %s112 = int_to_ptr.vmem [resolvable:$true] %s111
      %114 = dma.hbm_to_vmem [thread:$0]  %s110, 16, %s112, [#allocation12]
    $region45: #{tpu_custom_call.1} parent=1 // pred_fallthru
      _
    // Predicated region
    $region46: #{tpu_custom_call.1} parent=1 // pred_check
      _
    $region47: #{tpu_custom_call.1} parent=1 // pred_check_branch
      %116 = sbr.rel (0) target = $region49
    $region48: #{tpu_custom_call.1} parent=1 // pred_region
      _
    $region49: #{tpu_custom_call.1} parent=1 // pred_fallthru
      _
    // Predicated region
    $region50: #{tpu_custom_call.1} parent=1 // pred_check
      _
    $region51: #{tpu_custom_call.1} parent=1 // pred_check_branch
      %118 = sbr.rel (0) target = $region53
    $region52: #{tpu_custom_call.1} parent=1 // pred_region
      _
    $region53: #{tpu_custom_call.1} parent=1 // pred_fallthru
      _
    // Predicated region
    $region54: #{tpu_custom_call.1} parent=1 // pred_check
      _
    $region55: #{tpu_custom_call.1} parent=1 // pred_check_branch
      %120 = sbr.rel (0) target = $region57
    $region56: #{tpu_custom_call.1} parent=1 // pred_region
      _
    $region57: #{tpu_custom_call.1} parent=1 // pred_fallthru
      _
    // Predicated region
    $region58: #{tpu_custom_call.1} parent=1 // pred_check
      _
    $region59: #{tpu_custom_call.1} parent=1 // pred_check_branch
      %122 = sbr.rel (0) target = $region61
    $region60: #{tpu_custom_call.1} parent=1 // pred_region
      _
    $region61: #{tpu_custom_call.1} parent=1 // pred_fallthru
      _
    // Predicated region
    $region62: #{tpu_custom_call.1} parent=1 // pred_check
      _
    $region63: #{tpu_custom_call.1} parent=1 // pred_check_branch
      %124 = sbr.rel (0) target = $region65
    $region64: #{tpu_custom_call.1} parent=1 // pred_region
      %126 = dma.done [#allocation4], 768
    $region65: #{tpu_custom_call.1} parent=1 // pred_fallthru
      _
    // Predicated region
    $region66: #{tpu_custom_call.1} parent=1 // pred_check
      _
    $region67: #{tpu_custom_call.1} parent=1 // pred_check_branch
      %128 = sbr.rel (0) target = $region69
    $region68: #{tpu_custom_call.1} parent=1 // pred_region
      %130 = dma.done [#allocation6], 24576
    $region69: #{tpu_custom_call.1} parent=1 // pred_fallthru
      _
    // Predicated region
    $region70: #{tpu_custom_call.1} parent=1 // pred_check
      _
    $region71: #{tpu_custom_call.1} parent=1 // pred_check_branch
      %132 = sbr.rel (0) target = $region73
    $region72: #{tpu_custom_call.1} parent=1 // pred_region
      %134 = dma.done [#allocation6], 8192
    $region73: #{tpu_custom_call.1} parent=1 // pred_fallthru
      _
    // Predicated region
    $region74: #{tpu_custom_call.1} parent=1 // pred_check
      _
    $region75: #{tpu_custom_call.1} parent=1 // pred_check_branch
      %136 = sbr.rel (0) target = $region77
    $region76: #{tpu_custom_call.1} parent=1 // pred_region
      %138 = dma.done [#allocation9], 32
    $region77: #{tpu_custom_call.1} parent=1 // pred_fallthru
      _
    // Predicated region
    $region78: #{tpu_custom_call.1} parent=1 // pred_check
      _
    $region79: #{tpu_custom_call.1} parent=1 // pred_check_branch
      %140 = sbr.rel (0) target = $region81
    $region80: #{tpu_custom_call.1} parent=1 // pred_region
      %142 = dma.done [#allocation9], 16
    $region81: #{tpu_custom_call.1} parent=1 // pred_fallthru
      _
    // Predicated region
    $region82: #{tpu_custom_call.1} parent=1 // pred_check
      _
    $region83: #{tpu_custom_call.1} parent=1 // pred_check_branch
      %144 = sbr.rel (0) target = $region85
    $region84: #{tpu_custom_call.1} parent=1 // pred_region
      %146 = dma.done [#allocation12], 16
    $region85: #{tpu_custom_call.1} parent=1 // pred_fallthru
      _
    // Predicated region
    $region86: #{tpu_custom_call.1} parent=1 // pred_check
      _
    $region87: #{tpu_custom_call.1} parent=1 // pred_check_branch
      %148 = sbr.rel (0) target = $region89
    $region88: #{tpu_custom_call.1} parent=1 // pred_region
      %150 = dma.done [#allocation12], 16
    $region89: #{tpu_custom_call.1} parent=1 // pred_fallthru
      _
    %v152 = vld [vmem:[#allocation3] sm:$0xff]
    %v153 = vld [vmem:[#allocation3 + $0x8] sm:$0xff]
    %v154 = vld [vmem:[#allocation3 + $0x10] sm:$0xff]
    %v155 = vld [vmem:[#allocation3 + $0x18] sm:$0xff]
    %v156 = vld [vmem:[#allocation3 + $0x20] sm:$0xff]
    %v157 = vld [vmem:[#allocation3 + $0x28] sm:$0xff]
    %v158 = vpack.c.bf16 %v152, %v152
    %v159 = vpack.c.bf16 %v153, %v153
    %v160 = vpack.c.bf16 %v154, %v154
    %v161 = vpack.c.bf16 %v155, %v155
    %v162 = vpack.c.bf16 %v156, %v156
    %v163 = vpack.c.bf16 %v157, %v157
    %v164 = vld [vmem:[#allocation5] sm:$0xff]
    %v165 = vld [vmem:[#allocation5 + $0x8] sm:$0xff]
    %v166 = vld [vmem:[#allocation5 + $0x10] sm:$0xff]
    %v167 = vld [vmem:[#allocation5 + $0x18] sm:$0xff]
    %v168 = vld [vmem:[#allocation5 + $0x20] sm:$0xff]
    %v169 = vld [vmem:[#allocation5 + $0x28] sm:$0xff]
    %v170 = vld [vmem:[#allocation5 + $0x30] sm:$0xff]
    %v171 = vld [vmem:[#allocation5 + $0x38] sm:$0xff]
    %v172 = vld [vmem:[#allocation5 + $0x40] sm:$0xff]
    %v173 = vld [vmem:[#allocation5 + $0x48] sm:$0xff]
    %v174 = vld [vmem:[#allocation5 + $0x50] sm:$0xff]
    %v175 = vld [vmem:[#allocation5 + $0x58] sm:$0xff]
    %v176 = vld [vmem:[#allocation5 + $0x60] sm:$0xff]
    %v177 = vld [vmem:[#allocation5 + $0x68] sm:$0xff]
    %v178 = vld [vmem:[#allocation5 + $0x70] sm:$0xff]
    %v179 = vld [vmem:[#allocation5 + $0x78] sm:$0xff]
    %v180 = vld [vmem:[#allocation5 + $0x80] sm:$0xff]
    %v181 = vld [vmem:[#allocation5 + $0x88] sm:$0xff]
    %v182 = vld [vmem:[#allocation5 + $0x90] sm:$0xff]
    %v183 = vld [vmem:[#allocation5 + $0x98] sm:$0xff]
    %v184 = vld [vmem:[#allocation5 + $0xa0] sm:$0xff]
    %v185 = vld [vmem:[#allocation5 + $0xa8] sm:$0xff]
    %v186 = vld [vmem:[#allocation5 + $0xb0] sm:$0xff]
    %v187 = vld [vmem:[#allocation5 + $0xb8] sm:$0xff]
    %v188 = vld [vmem:[#allocation5 + $0xc0] sm:$0xff]
    %v189 = vld [vmem:[#allocation5 + $0xc8] sm:$0xff]
    %v190 = vld [vmem:[#allocation5 + $0xd0] sm:$0xff]
    %v191 = vld [vmem:[#allocation5 + $0xd8] sm:$0xff]
    %v192 = vld [vmem:[#allocation5 + $0xe0] sm:$0xff]
    %v193 = vld [vmem:[#allocation5 + $0xe8] sm:$0xff]
    %v194 = vld [vmem:[#allocation5 + $0xf0] sm:$0xff]
    %v195 = vld [vmem:[#allocation5 + $0xf8] sm:$0xff]
    %v196 = vld [vmem:[#allocation5 + $0x100] sm:$0xff]
    %v197 = vld [vmem:[#allocation5 + $0x108] sm:$0xff]
    %v198 = vld [vmem:[#allocation5 + $0x110] sm:$0xff]
    %v199 = vld [vmem:[#allocation5 + $0x118] sm:$0xff]
    %v200 = vld [vmem:[#allocation5 + $0x120] sm:$0xff]
    %v201 = vld [vmem:[#allocation5 + $0x128] sm:$0xff]
    %v202 = vld [vmem:[#allocation5 + $0x130] sm:$0xff]
    %v203 = vld [vmem:[#allocation5 + $0x138] sm:$0xff]
    %v204 = vld [vmem:[#allocation5 + $0x140] sm:$0xff]
    %v205 = vld [vmem:[#allocation5 + $0x148] sm:$0xff]
    %v206 = vld [vmem:[#allocation5 + $0x150] sm:$0xff]
    %v207 = vld [vmem:[#allocation5 + $0x158] sm:$0xff]
    %v208 = vld [vmem:[#allocation5 + $0x160] sm:$0xff]
    %v209 = vld [vmem:[#allocation5 + $0x168] sm:$0xff]
    %v210 = vld [vmem:[#allocation5 + $0x170] sm:$0xff]
    %v211 = vld [vmem:[#allocation5 + $0x178] sm:$0xff]
    %v212 = vld [vmem:[#allocation5 + $0x180] sm:$0xff]
    %v213 = vld [vmem:[#allocation5 + $0x188] sm:$0xff]
    %v214 = vld [vmem:[#allocation5 + $0x190] sm:$0xff]
    %v215 = vld [vmem:[#allocation5 + $0x198] sm:$0xff]
    %v216 = vld [vmem:[#allocation5 + $0x1a0] sm:$0xff]
    %v217 = vld [vmem:[#allocation5 + $0x1a8] sm:$0xff]
    %v218 = vld [vmem:[#allocation5 + $0x1b0] sm:$0xff]
    %v219 = vld [vmem:[#allocation5 + $0x1b8] sm:$0xff]
    %v220 = vld [vmem:[#allocation5 + $0x1c0] sm:$0xff]
    %v221 = vld [vmem:[#allocation5 + $0x1c8] sm:$0xff]
    %v222 = vld [vmem:[#allocation5 + $0x1d0] sm:$0xff]
    %v223 = vld [vmem:[#allocation5 + $0x1d8] sm:$0xff]
    %v224 = vld [vmem:[#allocation5 + $0x1e0] sm:$0xff]
    %v225 = vld [vmem:[#allocation5 + $0x1e8] sm:$0xff]
    %v226 = vld [vmem:[#allocation5 + $0x1f0] sm:$0xff]
    %v227 = vld [vmem:[#allocation5 + $0x1f8] sm:$0xff]
    %v228 = vld [vmem:[#allocation5 + $0x200] sm:$0xff]
    %v229 = vld [vmem:[#allocation5 + $0x208] sm:$0xff]
    %v230 = vld [vmem:[#allocation5 + $0x210] sm:$0xff]
    %v231 = vld [vmem:[#allocation5 + $0x218] sm:$0xff]
    %v232 = vld [vmem:[#allocation5 + $0x220] sm:$0xff]
    %v233 = vld [vmem:[#allocation5 + $0x228] sm:$0xff]
    %v234 = vld [vmem:[#allocation5 + $0x230] sm:$0xff]
    %v235 = vld [vmem:[#allocation5 + $0x238] sm:$0xff]
    %v236 = vld [vmem:[#allocation5 + $0x240] sm:$0xff]
    %v237 = vld [vmem:[#allocation5 + $0x248] sm:$0xff]
    %v238 = vld [vmem:[#allocation5 + $0x250] sm:$0xff]
    %v239 = vld [vmem:[#allocation5 + $0x258] sm:$0xff]
    %v240 = vld [vmem:[#allocation5 + $0x260] sm:$0xff]
    %v241 = vld [vmem:[#allocation5 + $0x268] sm:$0xff]
    %v242 = vld [vmem:[#allocation5 + $0x270] sm:$0xff]
    %v243 = vld [vmem:[#allocation5 + $0x278] sm:$0xff]
    %v244 = vld [vmem:[#allocation5 + $0x280] sm:$0xff]
    %v245 = vld [vmem:[#allocation5 + $0x288] sm:$0xff]
    %v246 = vld [vmem:[#allocation5 + $0x290] sm:$0xff]
    %v247 = vld [vmem:[#allocation5 + $0x298] sm:$0xff]
    %v248 = vld [vmem:[#allocation5 + $0x2a0] sm:$0xff]
    %v249 = vld [vmem:[#allocation5 + $0x2a8] sm:$0xff]
    %v250 = vld [vmem:[#allocation5 + $0x2b0] sm:$0xff]
    %v251 = vld [vmem:[#allocation5 + $0x2b8] sm:$0xff]
    %v252 = vld [vmem:[#allocation5 + $0x2c0] sm:$0xff]
    %v253 = vld [vmem:[#allocation5 + $0x2c8] sm:$0xff]
    %v254 = vld [vmem:[#allocation5 + $0x2d0] sm:$0xff]
    %v255 = vld [vmem:[#allocation5 + $0x2d8] sm:$0xff]
    %v256 = vld [vmem:[#allocation5 + $0x2e0] sm:$0xff]
    %v257 = vld [vmem:[#allocation5 + $0x2e8] sm:$0xff]
    %v258 = vld [vmem:[#allocation5 + $0x2f0] sm:$0xff]
    %v259 = vld [vmem:[#allocation5 + $0x2f8] sm:$0xff]
    %v260 = vld [vmem:[#allocation5 + $0x300] sm:$0xff]
    %v261 = vld [vmem:[#allocation5 + $0x308] sm:$0xff]
    %v262 = vld [vmem:[#allocation5 + $0x310] sm:$0xff]
    %v263 = vld [vmem:[#allocation5 + $0x318] sm:$0xff]
    %v264 = vld [vmem:[#allocation5 + $0x320] sm:$0xff]
    %v265 = vld [vmem:[#allocation5 + $0x328] sm:$0xff]
    %v266 = vld [vmem:[#allocation5 + $0x330] sm:$0xff]
    %v267 = vld [vmem:[#allocation5 + $0x338] sm:$0xff]
    %v268 = vld [vmem:[#allocation5 + $0x340] sm:$0xff]
    %v269 = vld [vmem:[#allocation5 + $0x348] sm:$0xff]
    %v270 = vld [vmem:[#allocation5 + $0x350] sm:$0xff]
    %v271 = vld [vmem:[#allocation5 + $0x358] sm:$0xff]
    %v272 = vld [vmem:[#allocation5 + $0x360] sm:$0xff]
    %v273 = vld [vmem:[#allocation5 + $0x368] sm:$0xff]
    %v274 = vld [vmem:[#allocation5 + $0x370] sm:$0xff]
    %v275 = vld [vmem:[#allocation5 + $0x378] sm:$0xff]
    %v276 = vld [vmem:[#allocation5 + $0x380] sm:$0xff]
    %v277 = vld [vmem:[#allocation5 + $0x388] sm:$0xff]
    %v278 = vld [vmem:[#allocation5 + $0x390] sm:$0xff]
    %v279 = vld [vmem:[#allocation5 + $0x398] sm:$0xff]
    %v280 = vld [vmem:[#allocation5 + $0x3a0] sm:$0xff]
    %v281 = vld [vmem:[#allocation5 + $0x3a8] sm:$0xff]
    %v282 = vld [vmem:[#allocation5 + $0x3b0] sm:$0xff]
    %v283 = vld [vmem:[#allocation5 + $0x3b8] sm:$0xff]
    %v284 = vld [vmem:[#allocation5 + $0x3c0] sm:$0xff]
    %v285 = vld [vmem:[#allocation5 + $0x3c8] sm:$0xff]
    %v286 = vld [vmem:[#allocation5 + $0x3d0] sm:$0xff]
    %v287 = vld [vmem:[#allocation5 + $0x3d8] sm:$0xff]
    %v288 = vld [vmem:[#allocation5 + $0x3e0] sm:$0xff]
    %v289 = vld [vmem:[#allocation5 + $0x3e8] sm:$0xff]
    %v290 = vld [vmem:[#allocation5 + $0x3f0] sm:$0xff]
    %v291 = vld [vmem:[#allocation5 + $0x3f8] sm:$0xff]
    %v292 = vld [vmem:[#allocation5 + $0x400] sm:$0xff]
    %v293 = vld [vmem:[#allocation5 + $0x408] sm:$0xff]
    %v294 = vld [vmem:[#allocation5 + $0x410] sm:$0xff]
    %v295 = vld [vmem:[#allocation5 + $0x418] sm:$0xff]
    %v296 = vld [vmem:[#allocation5 + $0x420] sm:$0xff]
    %v297 = vld [vmem:[#allocation5 + $0x428] sm:$0xff]
    %v298 = vld [vmem:[#allocation5 + $0x430] sm:$0xff]
    %v299 = vld [vmem:[#allocation5 + $0x438] sm:$0xff]
    %v300 = vld [vmem:[#allocation5 + $0x440] sm:$0xff]
    %v301 = vld [vmem:[#allocation5 + $0x448] sm:$0xff]
    %v302 = vld [vmem:[#allocation5 + $0x450] sm:$0xff]
    %v303 = vld [vmem:[#allocation5 + $0x458] sm:$0xff]
    %v304 = vld [vmem:[#allocation5 + $0x460] sm:$0xff]
    %v305 = vld [vmem:[#allocation5 + $0x468] sm:$0xff]
    %v306 = vld [vmem:[#allocation5 + $0x470] sm:$0xff]
    %v307 = vld [vmem:[#allocation5 + $0x478] sm:$0xff]
    %v308 = vld [vmem:[#allocation5 + $0x480] sm:$0xff]
    %v309 = vld [vmem:[#allocation5 + $0x488] sm:$0xff]
    %v310 = vld [vmem:[#allocation5 + $0x490] sm:$0xff]
    %v311 = vld [vmem:[#allocation5 + $0x498] sm:$0xff]
    %v312 = vld [vmem:[#allocation5 + $0x4a0] sm:$0xff]
    %v313 = vld [vmem:[#allocation5 + $0x4a8] sm:$0xff]
    %v314 = vld [vmem:[#allocation5 + $0x4b0] sm:$0xff]
    %v315 = vld [vmem:[#allocation5 + $0x4b8] sm:$0xff]
    %v316 = vld [vmem:[#allocation5 + $0x4c0] sm:$0xff]
    %v317 = vld [vmem:[#allocation5 + $0x4c8] sm:$0xff]
    %v318 = vld [vmem:[#allocation5 + $0x4d0] sm:$0xff]
    %v319 = vld [vmem:[#allocation5 + $0x4d8] sm:$0xff]
    %v320 = vld [vmem:[#allocation5 + $0x4e0] sm:$0xff]
    %v321 = vld [vmem:[#allocation5 + $0x4e8] sm:$0xff]
    %v322 = vld [vmem:[#allocation5 + $0x4f0] sm:$0xff]
    %v323 = vld [vmem:[#allocation5 + $0x4f8] sm:$0xff]
    %v324 = vld [vmem:[#allocation5 + $0x500] sm:$0xff]
    %v325 = vld [vmem:[#allocation5 + $0x508] sm:$0xff]
    %v326 = vld [vmem:[#allocation5 + $0x510] sm:$0xff]
    %v327 = vld [vmem:[#allocation5 + $0x518] sm:$0xff]
    %v328 = vld [vmem:[#allocation5 + $0x520] sm:$0xff]
    %v329 = vld [vmem:[#allocation5 + $0x528] sm:$0xff]
    %v330 = vld [vmem:[#allocation5 + $0x530] sm:$0xff]
    %v331 = vld [vmem:[#allocation5 + $0x538] sm:$0xff]
    %v332 = vld [vmem:[#allocation5 + $0x540] sm:$0xff]
    %v333 = vld [vmem:[#allocation5 + $0x548] sm:$0xff]
    %v334 = vld [vmem:[#allocation5 + $0x550] sm:$0xff]
    %v335 = vld [vmem:[#allocation5 + $0x558] sm:$0xff]
    %v336 = vld [vmem:[#allocation5 + $0x560] sm:$0xff]
    %v337 = vld [vmem:[#allocation5 + $0x568] sm:$0xff]
    %v338 = vld [vmem:[#allocation5 + $0x570] sm:$0xff]
    %v339 = vld [vmem:[#allocation5 + $0x578] sm:$0xff]
    %v340 = vld [vmem:[#allocation5 + $0x580] sm:$0xff]
    %v341 = vld [vmem:[#allocation5 + $0x588] sm:$0xff]
    %v342 = vld [vmem:[#allocation5 + $0x590] sm:$0xff]
    %v343 = vld [vmem:[#allocation5 + $0x598] sm:$0xff]
    %v344 = vld [vmem:[#allocation5 + $0x5a0] sm:$0xff]
    %v345 = vld [vmem:[#allocation5 + $0x5a8] sm:$0xff]
    %v346 = vld [vmem:[#allocation5 + $0x5b0] sm:$0xff]
    %v347 = vld [vmem:[#allocation5 + $0x5b8] sm:$0xff]
    %v348 = vld [vmem:[#allocation5 + $0x5c0] sm:$0xff]
    %v349 = vld [vmem:[#allocation5 + $0x5c8] sm:$0xff]
    %v350 = vld [vmem:[#allocation5 + $0x5d0] sm:$0xff]
    %v351 = vld [vmem:[#allocation5 + $0x5d8] sm:$0xff]
    %v352 = vld [vmem:[#allocation5 + $0x5e0] sm:$0xff]
    %v353 = vld [vmem:[#allocation5 + $0x5e8] sm:$0xff]
    %v354 = vld [vmem:[#allocation5 + $0x5f0] sm:$0xff]
    %v355 = vld [vmem:[#allocation5 + $0x5f8] sm:$0xff]
    %v356 = vld [vmem:[%s2] sm:$0xf]
    %v358 = vperm.slane %v356, 0
    %v359 = vperm.slane %v356, 1
    %v360 = vperm.slane %v356, 2
    %v361 = vperm.slane %v356, 3
    %v558 = vunpack.c.l.b16 %v164
    %v559 = vunpack.c.h.b16 %v164
    %v560 = vunpack.c.l.b16 %v165
    %v561 = vunpack.c.h.b16 %v165
    %v562 = vunpack.c.l.b16 %v166
    %v563 = vunpack.c.h.b16 %v166
    %v564 = vunpack.c.l.b16 %v167
    %v565 = vunpack.c.h.b16 %v167
    %v566 = vunpack.c.l.b16 %v168
    %v567 = vunpack.c.h.b16 %v168
    %v568 = vunpack.c.l.b16 %v169
    %v569 = vunpack.c.h.b16 %v169
    %v570 = vunpack.c.l.b16 %v170
    %v571 = vunpack.c.h.b16 %v170
    %v572 = vunpack.c.l.b16 %v171
    %v573 = vunpack.c.h.b16 %v171
    %v574 = vunpack.c.l.b16 %v172
    %v575 = vunpack.c.h.b16 %v172
    %v576 = vunpack.c.l.b16 %v173
    %v577 = vunpack.c.h.b16 %v173
    %v578 = vunpack.c.l.b16 %v174
    %v579 = vunpack.c.h.b16 %v174
    %v580 = vunpack.c.l.b16 %v175
    %v581 = vunpack.c.h.b16 %v175
    %v582 = vunpack.c.l.b16 %v176
    %v583 = vunpack.c.h.b16 %v176
    %v584 = vunpack.c.l.b16 %v177
    %v585 = vunpack.c.h.b16 %v177
    %v586 = vunpack.c.l.b16 %v178
    %v587 = vunpack.c.h.b16 %v178
    %v588 = vunpack.c.l.b16 %v179
    %v589 = vunpack.c.h.b16 %v179
    %v590 = vunpack.c.l.b16 %v180
    %v591 = vunpack.c.h.b16 %v180
    %v592 = vunpack.c.l.b16 %v181
    %v593 = vunpack.c.h.b16 %v181
    %v594 = vunpack.c.l.b16 %v182
    %v595 = vunpack.c.h.b16 %v182
    %v596 = vunpack.c.l.b16 %v183
    %v597 = vunpack.c.h.b16 %v183
    %v598 = vunpack.c.l.b16 %v184
    %v599 = vunpack.c.h.b16 %v184
    %v600 = vunpack.c.l.b16 %v185
    %v601 = vunpack.c.h.b16 %v185
    %v602 = vunpack.c.l.b16 %v186
    %v603 = vunpack.c.h.b16 %v186
    %v604 = vunpack.c.l.b16 %v187
    %v605 = vunpack.c.h.b16 %v187
    %v606 = vunpack.c.l.b16 %v188
    %v607 = vunpack.c.h.b16 %v188
    %v608 = vunpack.c.l.b16 %v189
    %v609 = vunpack.c.h.b16 %v189
    %v610 = vunpack.c.l.b16 %v190
    %v611 = vunpack.c.h.b16 %v190
    %v612 = vunpack.c.l.b16 %v191
    %v613 = vunpack.c.h.b16 %v191
    %v614 = vunpack.c.l.b16 %v192
    %v615 = vunpack.c.h.b16 %v192
    %v616 = vunpack.c.l.b16 %v193
    %v617 = vunpack.c.h.b16 %v193
    %v618 = vunpack.c.l.b16 %v194
    %v619 = vunpack.c.h.b16 %v194
    %v620 = vunpack.c.l.b16 %v195
    %v621 = vunpack.c.h.b16 %v195
    %v622 = vunpack.c.l.b16 %v196
    %v623 = vunpack.c.h.b16 %v196
    %v624 = vunpack.c.l.b16 %v197
    %v625 = vunpack.c.h.b16 %v197
    %v626 = vunpack.c.l.b16 %v198
    %v627 = vunpack.c.h.b16 %v198
    %v628 = vunpack.c.l.b16 %v199
    %v629 = vunpack.c.h.b16 %v199
    %v630 = vunpack.c.l.b16 %v200
    %v631 = vunpack.c.h.b16 %v200
    %v632 = vunpack.c.l.b16 %v201
    %v633 = vunpack.c.h.b16 %v201
    %v634 = vunpack.c.l.b16 %v202
    %v635 = vunpack.c.h.b16 %v202
    %v636 = vunpack.c.l.b16 %v203
    %v637 = vunpack.c.h.b16 %v203
    %v638 = vunpack.c.l.b16 %v204
    %v639 = vunpack.c.h.b16 %v204
    %v640 = vunpack.c.l.b16 %v205
    %v641 = vunpack.c.h.b16 %v205
    %v642 = vunpack.c.l.b16 %v206
    %v643 = vunpack.c.h.b16 %v206
    %v644 = vunpack.c.l.b16 %v207
    %v645 = vunpack.c.h.b16 %v207
    %v646 = vunpack.c.l.b16 %v208
    %v647 = vunpack.c.h.b16 %v208
    %v648 = vunpack.c.l.b16 %v209
    %v649 = vunpack.c.h.b16 %v209
    %v650 = vunpack.c.l.b16 %v210
    %v651 = vunpack.c.h.b16 %v210
    %v652 = vunpack.c.l.b16 %v211
    %v653 = vunpack.c.h.b16 %v211
    %v654 = vunpack.c.l.b16 %v212
    %v655 = vunpack.c.h.b16 %v212
    %v656 = vunpack.c.l.b16 %v213
    %v657 = vunpack.c.h.b16 %v213
    %v658 = vunpack.c.l.b16 %v214
    %v659 = vunpack.c.h.b16 %v214
    %v660 = vunpack.c.l.b16 %v215
    %v661 = vunpack.c.h.b16 %v215
    %v662 = vunpack.c.l.b16 %v216
    %v663 = vunpack.c.h.b16 %v216
    %v664 = vunpack.c.l.b16 %v217
    %v665 = vunpack.c.h.b16 %v217
    %v666 = vunpack.c.l.b16 %v218
    %v667 = vunpack.c.h.b16 %v218
    %v668 = vunpack.c.l.b16 %v219
    %v669 = vunpack.c.h.b16 %v219
    %v670 = vunpack.c.l.b16 %v220
    %v671 = vunpack.c.h.b16 %v220
    %v672 = vunpack.c.l.b16 %v221
    %v673 = vunpack.c.h.b16 %v221
    %v674 = vunpack.c.l.b16 %v222
    %v675 = vunpack.c.h.b16 %v222
    %v676 = vunpack.c.l.b16 %v223
    %v677 = vunpack.c.h.b16 %v223
    %v678 = vunpack.c.l.b16 %v224
    %v679 = vunpack.c.h.b16 %v224
    %v680 = vunpack.c.l.b16 %v225
    %v681 = vunpack.c.h.b16 %v225
    %v682 = vunpack.c.l.b16 %v226
    %v683 = vunpack.c.h.b16 %v226
    %v684 = vunpack.c.l.b16 %v227
    %v685 = vunpack.c.h.b16 %v227
    %v686 = vunpack.c.l.b16 %v228
    %v687 = vunpack.c.h.b16 %v228
    %v688 = vunpack.c.l.b16 %v229
    %v689 = vunpack.c.h.b16 %v229
    %v690 = vunpack.c.l.b16 %v230
    %v691 = vunpack.c.h.b16 %v230
    %v692 = vunpack.c.l.b16 %v231
    %v693 = vunpack.c.h.b16 %v231
    %v694 = vunpack.c.l.b16 %v232
    %v695 = vunpack.c.h.b16 %v232
    %v696 = vunpack.c.l.b16 %v233
    %v697 = vunpack.c.h.b16 %v233
    %v698 = vunpack.c.l.b16 %v234
    %v699 = vunpack.c.h.b16 %v234
    %v700 = vunpack.c.l.b16 %v235
    %v701 = vunpack.c.h.b16 %v235
    %v702 = vunpack.c.l.b16 %v236
    %v703 = vunpack.c.h.b16 %v236
    %v704 = vunpack.c.l.b16 %v237
    %v705 = vunpack.c.h.b16 %v237
    %v706 = vunpack.c.l.b16 %v238
    %v707 = vunpack.c.h.b16 %v238
    %v708 = vunpack.c.l.b16 %v239
    %v709 = vunpack.c.h.b16 %v239
    %v710 = vunpack.c.l.b16 %v240
    %v711 = vunpack.c.h.b16 %v240
    %v712 = vunpack.c.l.b16 %v241
    %v713 = vunpack.c.h.b16 %v241
    %v714 = vunpack.c.l.b16 %v242
    %v715 = vunpack.c.h.b16 %v242
    %v716 = vunpack.c.l.b16 %v243
    %v717 = vunpack.c.h.b16 %v243
    %v718 = vunpack.c.l.b16 %v244
    %v719 = vunpack.c.h.b16 %v244
    %v720 = vunpack.c.l.b16 %v245
    %v721 = vunpack.c.h.b16 %v245
    %v722 = vunpack.c.l.b16 %v246
    %v723 = vunpack.c.h.b16 %v246
    %v724 = vunpack.c.l.b16 %v247
    %v725 = vunpack.c.h.b16 %v247
    %v726 = vunpack.c.l.b16 %v248
    %v727 = vunpack.c.h.b16 %v248
    %v728 = vunpack.c.l.b16 %v249
    %v729 = vunpack.c.h.b16 %v249
    %v730 = vunpack.c.l.b16 %v250
    %v731 = vunpack.c.h.b16 %v250
    %v732 = vunpack.c.l.b16 %v251
    %v733 = vunpack.c.h.b16 %v251
    %v734 = vunpack.c.l.b16 %v252
    %v735 = vunpack.c.h.b16 %v252
    %v736 = vunpack.c.l.b16 %v253
    %v737 = vunpack.c.h.b16 %v253
    %v738 = vunpack.c.l.b16 %v254
    %v739 = vunpack.c.h.b16 %v254
    %v740 = vunpack.c.l.b16 %v255
    %v741 = vunpack.c.h.b16 %v255
    %v742 = vunpack.c.l.b16 %v256
    %v743 = vunpack.c.h.b16 %v256
    %v744 = vunpack.c.l.b16 %v257
    %v745 = vunpack.c.h.b16 %v257
    %v746 = vunpack.c.l.b16 %v258
    %v747 = vunpack.c.h.b16 %v258
    %v748 = vunpack.c.l.b16 %v259
    %v749 = vunpack.c.h.b16 %v259
    %v750 = vunpack.c.l.b16 %v260
    %v751 = vunpack.c.h.b16 %v260
    %v752 = vunpack.c.l.b16 %v261
    %v753 = vunpack.c.h.b16 %v261
    %v754 = vunpack.c.l.b16 %v262
    %v755 = vunpack.c.h.b16 %v262
    %v756 = vunpack.c.l.b16 %v263
    %v757 = vunpack.c.h.b16 %v263
    %v758 = vunpack.c.l.b16 %v264
    %v759 = vunpack.c.h.b16 %v264
    %v760 = vunpack.c.l.b16 %v265
    %v761 = vunpack.c.h.b16 %v265
    %v762 = vunpack.c.l.b16 %v266
    %v763 = vunpack.c.h.b16 %v266
    %v764 = vunpack.c.l.b16 %v267
    %v765 = vunpack.c.h.b16 %v267
    %v766 = vunpack.c.l.b16 %v268
    %v767 = vunpack.c.h.b16 %v268
    %v768 = vunpack.c.l.b16 %v269
    %v769 = vunpack.c.h.b16 %v269
    %v770 = vunpack.c.l.b16 %v270
    %v771 = vunpack.c.h.b16 %v270
    %v772 = vunpack.c.l.b16 %v271
    %v773 = vunpack.c.h.b16 %v271
    %v774 = vunpack.c.l.b16 %v272
    %v775 = vunpack.c.h.b16 %v272
    %v776 = vunpack.c.l.b16 %v273
    %v777 = vunpack.c.h.b16 %v273
    %v778 = vunpack.c.l.b16 %v274
    %v779 = vunpack.c.h.b16 %v274
    %v780 = vunpack.c.l.b16 %v275
    %v781 = vunpack.c.h.b16 %v275
    %v782 = vunpack.c.l.b16 %v276
    %v783 = vunpack.c.h.b16 %v276
    %v784 = vunpack.c.l.b16 %v277
    %v785 = vunpack.c.h.b16 %v277
    %v786 = vunpack.c.l.b16 %v278
    %v787 = vunpack.c.h.b16 %v278
    %v788 = vunpack.c.l.b16 %v279
    %v789 = vunpack.c.h.b16 %v279
    %v790 = vunpack.c.l.b16 %v280
    %v791 = vunpack.c.h.b16 %v280
    %v792 = vunpack.c.l.b16 %v281
    %v793 = vunpack.c.h.b16 %v281
    %v794 = vunpack.c.l.b16 %v282
    %v795 = vunpack.c.h.b16 %v282
    %v796 = vunpack.c.l.b16 %v283
    %v797 = vunpack.c.h.b16 %v283
    %v798 = vunpack.c.l.b16 %v284
    %v799 = vunpack.c.h.b16 %v284
    %v800 = vunpack.c.l.b16 %v285
    %v801 = vunpack.c.h.b16 %v285
    %v802 = vunpack.c.l.b16 %v286
    %v803 = vunpack.c.h.b16 %v286
    %v804 = vunpack.c.l.b16 %v287
    %v805 = vunpack.c.h.b16 %v287
    %v806 = vunpack.c.l.b16 %v288
    %v807 = vunpack.c.h.b16 %v288
    %v808 = vunpack.c.l.b16 %v289
    %v809 = vunpack.c.h.b16 %v289
    %v810 = vunpack.c.l.b16 %v290
    %v811 = vunpack.c.h.b16 %v290
    %v812 = vunpack.c.l.b16 %v291
    %v813 = vunpack.c.h.b16 %v291
    %v814 = vunpack.c.l.b16 %v292
    %v815 = vunpack.c.h.b16 %v292
    %v816 = vunpack.c.l.b16 %v293
    %v817 = vunpack.c.h.b16 %v293
    %v818 = vunpack.c.l.b16 %v294
    %v819 = vunpack.c.h.b16 %v294
    %v820 = vunpack.c.l.b16 %v295
    %v821 = vunpack.c.h.b16 %v295
    %v822 = vunpack.c.l.b16 %v296
    %v823 = vunpack.c.h.b16 %v296
    %v824 = vunpack.c.l.b16 %v297
    %v825 = vunpack.c.h.b16 %v297
    %v826 = vunpack.c.l.b16 %v298
    %v827 = vunpack.c.h.b16 %v298
    %v828 = vunpack.c.l.b16 %v299
    %v829 = vunpack.c.h.b16 %v299
    %v830 = vunpack.c.l.b16 %v300
    %v831 = vunpack.c.h.b16 %v300
    %v832 = vunpack.c.l.b16 %v301
    %v833 = vunpack.c.h.b16 %v301
    %v834 = vunpack.c.l.b16 %v302
    %v835 = vunpack.c.h.b16 %v302
    %v836 = vunpack.c.l.b16 %v303
    %v837 = vunpack.c.h.b16 %v303
    %v838 = vunpack.c.l.b16 %v304
    %v839 = vunpack.c.h.b16 %v304
    %v840 = vunpack.c.l.b16 %v305
    %v841 = vunpack.c.h.b16 %v305
    %v842 = vunpack.c.l.b16 %v306
    %v843 = vunpack.c.h.b16 %v306
    %v844 = vunpack.c.l.b16 %v307
    %v845 = vunpack.c.h.b16 %v307
    %v846 = vunpack.c.l.b16 %v308
    %v847 = vunpack.c.h.b16 %v308
    %v848 = vunpack.c.l.b16 %v309
    %v849 = vunpack.c.h.b16 %v309
    %v850 = vunpack.c.l.b16 %v310
    %v851 = vunpack.c.h.b16 %v310
    %v852 = vunpack.c.l.b16 %v311
    %v853 = vunpack.c.h.b16 %v311
    %v854 = vunpack.c.l.b16 %v312
    %v855 = vunpack.c.h.b16 %v312
    %v856 = vunpack.c.l.b16 %v313
    %v857 = vunpack.c.h.b16 %v313
    %v858 = vunpack.c.l.b16 %v314
    %v859 = vunpack.c.h.b16 %v314
    %v860 = vunpack.c.l.b16 %v315
    %v861 = vunpack.c.h.b16 %v315
    %v862 = vunpack.c.l.b16 %v316
    %v863 = vunpack.c.h.b16 %v316
    %v864 = vunpack.c.l.b16 %v317
    %v865 = vunpack.c.h.b16 %v317
    %v866 = vunpack.c.l.b16 %v318
    %v867 = vunpack.c.h.b16 %v318
    %v868 = vunpack.c.l.b16 %v319
    %v869 = vunpack.c.h.b16 %v319
    %v870 = vunpack.c.l.b16 %v320
    %v871 = vunpack.c.h.b16 %v320
    %v872 = vunpack.c.l.b16 %v321
    %v873 = vunpack.c.h.b16 %v321
    %v874 = vunpack.c.l.b16 %v322
    %v875 = vunpack.c.h.b16 %v322
    %v876 = vunpack.c.l.b16 %v323
    %v877 = vunpack.c.h.b16 %v323
    %v878 = vunpack.c.l.b16 %v324
    %v879 = vunpack.c.h.b16 %v324
    %v880 = vunpack.c.l.b16 %v325
    %v881 = vunpack.c.h.b16 %v325
    %v882 = vunpack.c.l.b16 %v326
    %v883 = vunpack.c.h.b16 %v326
    %v884 = vunpack.c.l.b16 %v327
    %v885 = vunpack.c.h.b16 %v327
    %v886 = vunpack.c.l.b16 %v328
    %v887 = vunpack.c.h.b16 %v328
    %v888 = vunpack.c.l.b16 %v329
    %v889 = vunpack.c.h.b16 %v329
    %v890 = vunpack.c.l.b16 %v330
    %v891 = vunpack.c.h.b16 %v330
    %v892 = vunpack.c.l.b16 %v331
    %v893 = vunpack.c.h.b16 %v331
    %v894 = vunpack.c.l.b16 %v332
    %v895 = vunpack.c.h.b16 %v332
    %v896 = vunpack.c.l.b16 %v333
    %v897 = vunpack.c.h.b16 %v333
    %v898 = vunpack.c.l.b16 %v334
    %v899 = vunpack.c.h.b16 %v334
    %v900 = vunpack.c.l.b16 %v335
    %v901 = vunpack.c.h.b16 %v335
    %v902 = vunpack.c.l.b16 %v336
    %v903 = vunpack.c.h.b16 %v336
    %v904 = vunpack.c.l.b16 %v337
    %v905 = vunpack.c.h.b16 %v337
    %v906 = vunpack.c.l.b16 %v338
    %v907 = vunpack.c.h.b16 %v338
    %v908 = vunpack.c.l.b16 %v339
    %v909 = vunpack.c.h.b16 %v339
    %v910 = vunpack.c.l.b16 %v340
    %v911 = vunpack.c.h.b16 %v340
    %v912 = vunpack.c.l.b16 %v341
    %v913 = vunpack.c.h.b16 %v341
    %v914 = vunpack.c.l.b16 %v342
    %v915 = vunpack.c.h.b16 %v342
    %v916 = vunpack.c.l.b16 %v343
    %v917 = vunpack.c.h.b16 %v343
    %v918 = vunpack.c.l.b16 %v344
    %v919 = vunpack.c.h.b16 %v344
    %v920 = vunpack.c.l.b16 %v345
    %v921 = vunpack.c.h.b16 %v345
    %v922 = vunpack.c.l.b16 %v346
    %v923 = vunpack.c.h.b16 %v346
    %v924 = vunpack.c.l.b16 %v347
    %v925 = vunpack.c.h.b16 %v347
    %v926 = vunpack.c.l.b16 %v348
    %v927 = vunpack.c.h.b16 %v348
    %v928 = vunpack.c.l.b16 %v349
    %v929 = vunpack.c.h.b16 %v349
    %v930 = vunpack.c.l.b16 %v350
    %v931 = vunpack.c.h.b16 %v350
    %v932 = vunpack.c.l.b16 %v351
    %v933 = vunpack.c.h.b16 %v351
    %v934 = vunpack.c.l.b16 %v352
    %v935 = vunpack.c.h.b16 %v352
    %v936 = vunpack.c.l.b16 %v353
    %v937 = vunpack.c.h.b16 %v353
    %v938 = vunpack.c.l.b16 %v354
    %v939 = vunpack.c.h.b16 %v354
    %v940 = vunpack.c.l.b16 %v355
    %v941 = vunpack.c.h.b16 %v355
    %v942 = vpack.c.b16 %v562, %v558
    %v943 = vpack.c.b16 %v563, %v559
    %v944 = vpack.c.b16 %v564, %v560
    %v945 = vpack.c.b16 %v565, %v561
    %v946 = vpack.c.b16 %v570, %v566
    %v947 = vpack.c.b16 %v571, %v567
    %v948 = vpack.c.b16 %v572, %v568
    %v949 = vpack.c.b16 %v573, %v569
    %v950 = vpack.c.b16 %v578, %v574
    %v951 = vpack.c.b16 %v579, %v575
    %v952 = vpack.c.b16 %v580, %v576
    %v953 = vpack.c.b16 %v581, %v577
    %v954 = vpack.c.b16 %v586, %v582
    %v955 = vpack.c.b16 %v587, %v583
    %v956 = vpack.c.b16 %v588, %v584
    %v957 = vpack.c.b16 %v589, %v585
    %v958 = vpack.c.b16 %v594, %v590
    %v959 = vpack.c.b16 %v595, %v591
    %v960 = vpack.c.b16 %v596, %v592
    %v961 = vpack.c.b16 %v597, %v593
    %v962 = vpack.c.b16 %v602, %v598
    %v963 = vpack.c.b16 %v603, %v599
    %v964 = vpack.c.b16 %v604, %v600
    %v965 = vpack.c.b16 %v605, %v601
    %v966 = vpack.c.b16 %v610, %v606
    %v967 = vpack.c.b16 %v611, %v607
    %v968 = vpack.c.b16 %v612, %v608
    %v969 = vpack.c.b16 %v613, %v609
    %v970 = vpack.c.b16 %v618, %v614
    %v971 = vpack.c.b16 %v619, %v615
    %v972 = vpack.c.b16 %v620, %v616
    %v973 = vpack.c.b16 %v621, %v617
    %v974 = vpack.c.b16 %v626, %v622
    %v975 = vpack.c.b16 %v627, %v623
    %v976 = vpack.c.b16 %v628, %v624
    %v977 = vpack.c.b16 %v629, %v625
    %v978 = vpack.c.b16 %v634, %v630
    %v979 = vpack.c.b16 %v635, %v631
    %v980 = vpack.c.b16 %v636, %v632
    %v981 = vpack.c.b16 %v637, %v633
    %v982 = vpack.c.b16 %v642, %v638
    %v983 = vpack.c.b16 %v643, %v639
    %v984 = vpack.c.b16 %v644, %v640
    %v985 = vpack.c.b16 %v645, %v641
    %v986 = vpack.c.b16 %v650, %v646
    %v987 = vpack.c.b16 %v651, %v647
    %v988 = vpack.c.b16 %v652, %v648
    %v989 = vpack.c.b16 %v653, %v649
    %v990 = vpack.c.b16 %v658, %v654
    %v991 = vpack.c.b16 %v659, %v655
    %v992 = vpack.c.b16 %v660, %v656
    %v993 = vpack.c.b16 %v661, %v657
    %v994 = vpack.c.b16 %v666, %v662
    %v995 = vpack.c.b16 %v667, %v663
    %v996 = vpack.c.b16 %v668, %v664
    %v997 = vpack.c.b16 %v669, %v665
    %v998 = vpack.c.b16 %v674, %v670
    %v999 = vpack.c.b16 %v675, %v671
    %v1000 = vpack.c.b16 %v676, %v672
    %v1001 = vpack.c.b16 %v677, %v673
    %v1002 = vpack.c.b16 %v682, %v678
    %v1003 = vpack.c.b16 %v683, %v679
    %v1004 = vpack.c.b16 %v684, %v680
    %v1005 = vpack.c.b16 %v685, %v681
    %v1006 = vpack.c.b16 %v690, %v686
    %v1007 = vpack.c.b16 %v691, %v687
    %v1008 = vpack.c.b16 %v692, %v688
    %v1009 = vpack.c.b16 %v693, %v689
    %v1010 = vpack.c.b16 %v698, %v694
    %v1011 = vpack.c.b16 %v699, %v695
    %v1012 = vpack.c.b16 %v700, %v696
    %v1013 = vpack.c.b16 %v701, %v697
    %v1014 = vpack.c.b16 %v706, %v702
    %v1015 = vpack.c.b16 %v707, %v703
    %v1016 = vpack.c.b16 %v708, %v704
    %v1017 = vpack.c.b16 %v709, %v705
    %v1018 = vpack.c.b16 %v714, %v710
    %v1019 = vpack.c.b16 %v715, %v711
    %v1020 = vpack.c.b16 %v716, %v712
    %v1021 = vpack.c.b16 %v717, %v713
    %v1022 = vpack.c.b16 %v722, %v718
    %v1023 = vpack.c.b16 %v723, %v719
    %v1024 = vpack.c.b16 %v724, %v720
    %v1025 = vpack.c.b16 %v725, %v721
    %v1026 = vpack.c.b16 %v730, %v726
    %v1027 = vpack.c.b16 %v731, %v727
    %v1028 = vpack.c.b16 %v732, %v728
    %v1029 = vpack.c.b16 %v733, %v729
    %v1030 = vpack.c.b16 %v738, %v734
    %v1031 = vpack.c.b16 %v739, %v735
    %v1032 = vpack.c.b16 %v740, %v736
    %v1033 = vpack.c.b16 %v741, %v737
    %v1034 = vpack.c.b16 %v746, %v742
    %v1035 = vpack.c.b16 %v747, %v743
    %v1036 = vpack.c.b16 %v748, %v744
    %v1037 = vpack.c.b16 %v749, %v745
    %v1038 = vpack.c.b16 %v754, %v750
    %v1039 = vpack.c.b16 %v755, %v751
    %v1040 = vpack.c.b16 %v756, %v752
    %v1041 = vpack.c.b16 %v757, %v753
    %v1042 = vpack.c.b16 %v762, %v758
    %v1043 = vpack.c.b16 %v763, %v759
    %v1044 = vpack.c.b16 %v764, %v760
    %v1045 = vpack.c.b16 %v765, %v761
    %v1046 = vpack.c.b16 %v770, %v766
    %v1047 = vpack.c.b16 %v771, %v767
    %v1048 = vpack.c.b16 %v772, %v768
    %v1049 = vpack.c.b16 %v773, %v769
    %v1050 = vpack.c.b16 %v778, %v774
    %v1051 = vpack.c.b16 %v779, %v775
    %v1052 = vpack.c.b16 %v780, %v776
    %v1053 = vpack.c.b16 %v781, %v777
    %v1054 = vpack.c.b16 %v786, %v782
    %v1055 = vpack.c.b16 %v787, %v783
    %v1056 = vpack.c.b16 %v788, %v784
    %v1057 = vpack.c.b16 %v789, %v785
    %v1058 = vpack.c.b16 %v794, %v790
    %v1059 = vpack.c.b16 %v795, %v791
    %v1060 = vpack.c.b16 %v796, %v792
    %v1061 = vpack.c.b16 %v797, %v793
    %v1062 = vpack.c.b16 %v802, %v798
    %v1063 = vpack.c.b16 %v803, %v799
    %v1064 = vpack.c.b16 %v804, %v800
    %v1065 = vpack.c.b16 %v805, %v801
    %v1066 = vpack.c.b16 %v810, %v806
    %v1067 = vpack.c.b16 %v811, %v807
    %v1068 = vpack.c.b16 %v812, %v808
    %v1069 = vpack.c.b16 %v813, %v809
    %v1070 = vpack.c.b16 %v818, %v814
    %v1071 = vpack.c.b16 %v819, %v815
    %v1072 = vpack.c.b16 %v820, %v816
    %v1073 = vpack.c.b16 %v821, %v817
    %v1074 = vpack.c.b16 %v826, %v822
    %v1075 = vpack.c.b16 %v827, %v823
    %v1076 = vpack.c.b16 %v828, %v824
    %v1077 = vpack.c.b16 %v829, %v825
    %v1078 = vpack.c.b16 %v834, %v830
    %v1079 = vpack.c.b16 %v835, %v831
    %v1080 = vpack.c.b16 %v836, %v832
    %v1081 = vpack.c.b16 %v837, %v833
    %v1082 = vpack.c.b16 %v842, %v838
    %v1083 = vpack.c.b16 %v843, %v839
    %v1084 = vpack.c.b16 %v844, %v840
    %v1085 = vpack.c.b16 %v845, %v841
    %v1086 = vpack.c.b16 %v850, %v846
    %v1087 = vpack.c.b16 %v851, %v847
    %v1088 = vpack.c.b16 %v852, %v848
    %v1089 = vpack.c.b16 %v853, %v849
    %v1090 = vpack.c.b16 %v858, %v854
    %v1091 = vpack.c.b16 %v859, %v855
    %v1092 = vpack.c.b16 %v860, %v856
    %v1093 = vpack.c.b16 %v861, %v857
    %v1094 = vpack.c.b16 %v866, %v862
    %v1095 = vpack.c.b16 %v867, %v863
    %v1096 = vpack.c.b16 %v868, %v864
    %v1097 = vpack.c.b16 %v869, %v865
    %v1098 = vpack.c.b16 %v874, %v870
    %v1099 = vpack.c.b16 %v875, %v871
    %v1100 = vpack.c.b16 %v876, %v872
    %v1101 = vpack.c.b16 %v877, %v873
    %v1102 = vpack.c.b16 %v882, %v878
    %v1103 = vpack.c.b16 %v883, %v879
    %v1104 = vpack.c.b16 %v884, %v880
    %v1105 = vpack.c.b16 %v885, %v881
    %v1106 = vpack.c.b16 %v890, %v886
    %v1107 = vpack.c.b16 %v891, %v887
    %v1108 = vpack.c.b16 %v892, %v888
    %v1109 = vpack.c.b16 %v893, %v889
    %v1110 = vpack.c.b16 %v898, %v894
    %v1111 = vpack.c.b16 %v899, %v895
    %v1112 = vpack.c.b16 %v900, %v896
    %v1113 = vpack.c.b16 %v901, %v897
    %v1114 = vpack.c.b16 %v906, %v902
    %v1115 = vpack.c.b16 %v907, %v903
    %v1116 = vpack.c.b16 %v908, %v904
    %v1117 = vpack.c.b16 %v909, %v905
    %v1118 = vpack.c.b16 %v914, %v910
    %v1119 = vpack.c.b16 %v915, %v911
    %v1120 = vpack.c.b16 %v916, %v912
    %v1121 = vpack.c.b16 %v917, %v913
    %v1122 = vpack.c.b16 %v922, %v918
    %v1123 = vpack.c.b16 %v923, %v919
    %v1124 = vpack.c.b16 %v924, %v920
    %v1125 = vpack.c.b16 %v925, %v921
    %v1126 = vpack.c.b16 %v930, %v926
    %v1127 = vpack.c.b16 %v931, %v927
    %v1128 = vpack.c.b16 %v932, %v928
    %v1129 = vpack.c.b16 %v933, %v929
    %v1130 = vpack.c.b16 %v938, %v934
    %v1131 = vpack.c.b16 %v939, %v935
    %v1132 = vpack.c.b16 %v940, %v936
    %v1133 = vpack.c.b16 %v941, %v937
    %1326 = vmatpush.bf16.msra.mxu0 %v970
    %1327 = vmatpush.bf16.msra.mxu0 %v966
    %1328 = vmatpush.bf16.msra.mxu0 %v962
    %1329 = vmatpush.bf16.msra.mxu0 %v958
    %1330 = vmatpush.bf16.msra.mxu0 %v954
    %1331 = vmatpush.bf16.msra.mxu0 %v950
    %1332 = vmatpush.bf16.msra.mxu0 %v946
    %1333 = vmatpush.bf16.msra.mxu0 %v942
    %1334 = vmatmul.bf16.gmra.mxu0 %v158
    %v1335 = vpop.f32.mrf.mxu0
    %v1336 = vadd.f32 %v358, %v1335
    %v1337 = vpop.f32.mrf.mxu0
    %1338 = vdwg.mxu0
    %1339 = vmatpush.bf16.msra.mxu0 %v1002
    %1340 = vmatpush.bf16.msra.mxu0 %v998
    %1341 = vmatpush.bf16.msra.mxu0 %v994
    %1342 = vmatpush.bf16.msra.mxu0 %v990
    %1343 = vmatpush.bf16.msra.mxu0 %v986
    %1344 = vmatpush.bf16.msra.mxu0 %v982
    %1345 = vmatpush.bf16.msra.mxu0 %v978
    %1346 = vmatpush.bf16.msra.mxu0 %v974
    %1347 = vmatmul.bf16.gmra.mxu0 %v159
    %v1348 = vpop.f32.mrf.mxu0
    %v1349 = vadd.f32 %v1336, %v1348
    %v1350 = vpop.f32.mrf.mxu0
    %1351 = vdwg.mxu0
    %1352 = vmatpush.bf16.msra.mxu0 %v1034
    %1353 = vmatpush.bf16.msra.mxu0 %v1030
    %1354 = vmatpush.bf16.msra.mxu0 %v1026
    %1355 = vmatpush.bf16.msra.mxu0 %v1022
    %1356 = vmatpush.bf16.msra.mxu0 %v1018
    %1357 = vmatpush.bf16.msra.mxu0 %v1014
    %1358 = vmatpush.bf16.msra.mxu0 %v1010
    %1359 = vmatpush.bf16.msra.mxu0 %v1006
    %1360 = vmatmul.bf16.gmra.mxu0 %v160
    %v1361 = vpop.f32.mrf.mxu0
    %v1362 = vadd.f32 %v1349, %v1361
    %v1363 = vpop.f32.mrf.mxu0
    %1364 = vdwg.mxu0
    %1365 = vmatpush.bf16.msra.mxu0 %v1066
    %1366 = vmatpush.bf16.msra.mxu0 %v1062
    %1367 = vmatpush.bf16.msra.mxu0 %v1058
    %1368 = vmatpush.bf16.msra.mxu0 %v1054
    %1369 = vmatpush.bf16.msra.mxu0 %v1050
    %1370 = vmatpush.bf16.msra.mxu0 %v1046
    %1371 = vmatpush.bf16.msra.mxu0 %v1042
    %1372 = vmatpush.bf16.msra.mxu0 %v1038
    %1373 = vmatmul.bf16.gmra.mxu0 %v161
    %v1374 = vpop.f32.mrf.mxu0
    %v1375 = vadd.f32 %v1362, %v1374
    %v1376 = vpop.f32.mrf.mxu0
    %1377 = vdwg.mxu0
    %1378 = vmatpush.bf16.msra.mxu0 %v1098
    %1379 = vmatpush.bf16.msra.mxu0 %v1094
    %1380 = vmatpush.bf16.msra.mxu0 %v1090
    %1381 = vmatpush.bf16.msra.mxu0 %v1086
    %1382 = vmatpush.bf16.msra.mxu0 %v1082
    %1383 = vmatpush.bf16.msra.mxu0 %v1078
    %1384 = vmatpush.bf16.msra.mxu0 %v1074
    %1385 = vmatpush.bf16.msra.mxu0 %v1070
    %1386 = vmatmul.bf16.gmra.mxu0 %v162
    %v1387 = vpop.f32.mrf.mxu0
    %v1388 = vadd.f32 %v1375, %v1387
    %v1389 = vpop.f32.mrf.mxu0
    %1390 = vdwg.mxu0
    %1391 = vmatpush.bf16.msra.mxu0 %v1130
    %1392 = vmatpush.bf16.msra.mxu0 %v1126
    %1393 = vmatpush.bf16.msra.mxu0 %v1122
    %1394 = vmatpush.bf16.msra.mxu0 %v1118
    %1395 = vmatpush.bf16.msra.mxu0 %v1114
    %1396 = vmatpush.bf16.msra.mxu0 %v1110
    %1397 = vmatpush.bf16.msra.mxu0 %v1106
    %1398 = vmatpush.bf16.msra.mxu0 %v1102
    %1399 = vmatmul.bf16.gmra.mxu0 %v163
    %v1400 = vpop.f32.mrf.mxu0
    %v1401 = vadd.f32 %v1388, %v1400
    %v1402 = vpop.f32.mrf.mxu0
    %1403 = vdwg.mxu0
    %1404 = vmatpush.bf16.msra.mxu0 %v971
    %1405 = vmatpush.bf16.msra.mxu0 %v967
    %1406 = vmatpush.bf16.msra.mxu0 %v963
    %1407 = vmatpush.bf16.msra.mxu0 %v959
    %1408 = vmatpush.bf16.msra.mxu0 %v955
    %1409 = vmatpush.bf16.msra.mxu0 %v951
    %1410 = vmatpush.bf16.msra.mxu0 %v947
    %1411 = vmatpush.bf16.msra.mxu0 %v943
    %1412 = vmatmul.bf16.gmra.mxu0 %v158
    %v1413 = vpop.f32.mrf.mxu0
    %v1414 = vadd.f32 %v359, %v1413
    %v1415 = vpop.f32.mrf.mxu0
    %1416 = vdwg.mxu0
    %1417 = vmatpush.bf16.msra.mxu0 %v1003
    %1418 = vmatpush.bf16.msra.mxu0 %v999
    %1419 = vmatpush.bf16.msra.mxu0 %v995
    %1420 = vmatpush.bf16.msra.mxu0 %v991
    %1421 = vmatpush.bf16.msra.mxu0 %v987
    %1422 = vmatpush.bf16.msra.mxu0 %v983
    %1423 = vmatpush.bf16.msra.mxu0 %v979
    %1424 = vmatpush.bf16.msra.mxu0 %v975
    %1425 = vmatmul.bf16.gmra.mxu0 %v159
    %v1426 = vpop.f32.mrf.mxu0
    %v1427 = vadd.f32 %v1414, %v1426
    %v1428 = vpop.f32.mrf.mxu0
    %1429 = vdwg.mxu0
    %1430 = vmatpush.bf16.msra.mxu0 %v1035
    %1431 = vmatpush.bf16.msra.mxu0 %v1031
    %1432 = vmatpush.bf16.msra.mxu0 %v1027
    %1433 = vmatpush.bf16.msra.mxu0 %v1023
    %1434 = vmatpush.bf16.msra.mxu0 %v1019
    %1435 = vmatpush.bf16.msra.mxu0 %v1015
    %1436 = vmatpush.bf16.msra.mxu0 %v1011
    %1437 = vmatpush.bf16.msra.mxu0 %v1007
    %1438 = vmatmul.bf16.gmra.mxu0 %v160
    %v1439 = vpop.f32.mrf.mxu0
    %v1440 = vadd.f32 %v1427, %v1439
    %v1441 = vpop.f32.mrf.mxu0
    %1442 = vdwg.mxu0
    %1443 = vmatpush.bf16.msra.mxu0 %v1067
    %1444 = vmatpush.bf16.msra.mxu0 %v1063
    %1445 = vmatpush.bf16.msra.mxu0 %v1059
    %1446 = vmatpush.bf16.msra.mxu0 %v1055
    %1447 = vmatpush.bf16.msra.mxu0 %v1051
    %1448 = vmatpush.bf16.msra.mxu0 %v1047
    %1449 = vmatpush.bf16.msra.mxu0 %v1043
    %1450 = vmatpush.bf16.msra.mxu0 %v1039
    %1451 = vmatmul.bf16.gmra.mxu0 %v161
    %v1452 = vpop.f32.mrf.mxu0
    %v1453 = vadd.f32 %v1440, %v1452
    %v1454 = vpop.f32.mrf.mxu0
    %1455 = vdwg.mxu0
    %1456 = vmatpush.bf16.msra.mxu0 %v1099
    %1457 = vmatpush.bf16.msra.mxu0 %v1095
    %1458 = vmatpush.bf16.msra.mxu0 %v1091
    %1459 = vmatpush.bf16.msra.mxu0 %v1087
    %1460 = vmatpush.bf16.msra.mxu0 %v1083
    %1461 = vmatpush.bf16.msra.mxu0 %v1079
    %1462 = vmatpush.bf16.msra.mxu0 %v1075
    %1463 = vmatpush.bf16.msra.mxu0 %v1071
    %1464 = vmatmul.bf16.gmra.mxu0 %v162
    %v1465 = vpop.f32.mrf.mxu0
    %v1466 = vadd.f32 %v1453, %v1465
    %v1467 = vpop.f32.mrf.mxu0
    %1468 = vdwg.mxu0
    %1469 = vmatpush.bf16.msra.mxu0 %v1131
    %1470 = vmatpush.bf16.msra.mxu0 %v1127
    %1471 = vmatpush.bf16.msra.mxu0 %v1123
    %1472 = vmatpush.bf16.msra.mxu0 %v1119
    %1473 = vmatpush.bf16.msra.mxu0 %v1115
    %1474 = vmatpush.bf16.msra.mxu0 %v1111
    %1475 = vmatpush.bf16.msra.mxu0 %v1107
    %1476 = vmatpush.bf16.msra.mxu0 %v1103
    %1477 = vmatmul.bf16.gmra.mxu0 %v163
    %v1478 = vpop.f32.mrf.mxu0
    %v1479 = vadd.f32 %v1466, %v1478
    %v1480 = vpop.f32.mrf.mxu0
    %1481 = vdwg.mxu0
    %1482 = vmatpush.bf16.msra.mxu0 %v972
    %1483 = vmatpush.bf16.msra.mxu0 %v968
    %1484 = vmatpush.bf16.msra.mxu0 %v964
    %1485 = vmatpush.bf16.msra.mxu0 %v960
    %1486 = vmatpush.bf16.msra.mxu0 %v956
    %1487 = vmatpush.bf16.msra.mxu0 %v952
    %1488 = vmatpush.bf16.msra.mxu0 %v948
    %1489 = vmatpush.bf16.msra.mxu0 %v944
    %1490 = vmatmul.bf16.gmra.mxu0 %v158
    %v1491 = vpop.f32.mrf.mxu0
    %v1492 = vadd.f32 %v360, %v1491
    %v1493 = vpop.f32.mrf.mxu0
    %1494 = vdwg.mxu0
    %1495 = vmatpush.bf16.msra.mxu0 %v1004
    %1496 = vmatpush.bf16.msra.mxu0 %v1000
    %1497 = vmatpush.bf16.msra.mxu0 %v996
    %1498 = vmatpush.bf16.msra.mxu0 %v992
    %1499 = vmatpush.bf16.msra.mxu0 %v988
    %1500 = vmatpush.bf16.msra.mxu0 %v984
    %1501 = vmatpush.bf16.msra.mxu0 %v980
    %1502 = vmatpush.bf16.msra.mxu0 %v976
    %1503 = vmatmul.bf16.gmra.mxu0 %v159
    %v1504 = vpop.f32.mrf.mxu0
    %v1505 = vadd.f32 %v1492, %v1504
    %v1506 = vpop.f32.mrf.mxu0
    %1507 = vdwg.mxu0
    %1508 = vmatpush.bf16.msra.mxu0 %v1036
    %1509 = vmatpush.bf16.msra.mxu0 %v1032
    %1510 = vmatpush.bf16.msra.mxu0 %v1028
    %1511 = vmatpush.bf16.msra.mxu0 %v1024
    %1512 = vmatpush.bf16.msra.mxu0 %v1020
    %1513 = vmatpush.bf16.msra.mxu0 %v1016
    %1514 = vmatpush.bf16.msra.mxu0 %v1012
    %1515 = vmatpush.bf16.msra.mxu0 %v1008
    %1516 = vmatmul.bf16.gmra.mxu0 %v160
    %v1517 = vpop.f32.mrf.mxu0
    %v1518 = vadd.f32 %v1505, %v1517
    %v1519 = vpop.f32.mrf.mxu0
    %1520 = vdwg.mxu0
    %1521 = vmatpush.bf16.msra.mxu0 %v1068
    %1522 = vmatpush.bf16.msra.mxu0 %v1064
    %1523 = vmatpush.bf16.msra.mxu0 %v1060
    %1524 = vmatpush.bf16.msra.mxu0 %v1056
    %1525 = vmatpush.bf16.msra.mxu0 %v1052
    %1526 = vmatpush.bf16.msra.mxu0 %v1048
    %1527 = vmatpush.bf16.msra.mxu0 %v1044
    %1528 = vmatpush.bf16.msra.mxu0 %v1040
    %1529 = vmatmul.bf16.gmra.mxu0 %v161
    %v1530 = vpop.f32.mrf.mxu0
    %v1531 = vadd.f32 %v1518, %v1530
    %v1532 = vpop.f32.mrf.mxu0
    %1533 = vdwg.mxu0
    %1534 = vmatpush.bf16.msra.mxu0 %v1100
    %1535 = vmatpush.bf16.msra.mxu0 %v1096
    %1536 = vmatpush.bf16.msra.mxu0 %v1092
    %1537 = vmatpush.bf16.msra.mxu0 %v1088
    %1538 = vmatpush.bf16.msra.mxu0 %v1084
    %1539 = vmatpush.bf16.msra.mxu0 %v1080
    %1540 = vmatpush.bf16.msra.mxu0 %v1076
    %1541 = vmatpush.bf16.msra.mxu0 %v1072
    %1542 = vmatmul.bf16.gmra.mxu0 %v162
    %v1543 = vpop.f32.mrf.mxu0
    %v1544 = vadd.f32 %v1531, %v1543
    %v1545 = vpop.f32.mrf.mxu0
    %1546 = vdwg.mxu0
    %1547 = vmatpush.bf16.msra.mxu0 %v1132
    %1548 = vmatpush.bf16.msra.mxu0 %v1128
    %1549 = vmatpush.bf16.msra.mxu0 %v1124
    %1550 = vmatpush.bf16.msra.mxu0 %v1120
    %1551 = vmatpush.bf16.msra.mxu0 %v1116
    %1552 = vmatpush.bf16.msra.mxu0 %v1112
    %1553 = vmatpush.bf16.msra.mxu0 %v1108
    %1554 = vmatpush.bf16.msra.mxu0 %v1104
    %1555 = vmatmul.bf16.gmra.mxu0 %v163
    %v1556 = vpop.f32.mrf.mxu0
    %v1557 = vadd.f32 %v1544, %v1556
    %v1558 = vpop.f32.mrf.mxu0
    %1559 = vdwg.mxu0
    %1560 = vmatpush.bf16.msra.mxu0 %v973
    %1561 = vmatpush.bf16.msra.mxu0 %v969
    %1562 = vmatpush.bf16.msra.mxu0 %v965
    %1563 = vmatpush.bf16.msra.mxu0 %v961
    %1564 = vmatpush.bf16.msra.mxu0 %v957
    %1565 = vmatpush.bf16.msra.mxu0 %v953
    %1566 = vmatpush.bf16.msra.mxu0 %v949
    %1567 = vmatpush.bf16.msra.mxu0 %v945
    %1568 = vmatmul.bf16.gmra.mxu0 %v158
    %v1569 = vpop.f32.mrf.mxu0
    %v1570 = vadd.f32 %v361, %v1569
    %v1571 = vpop.f32.mrf.mxu0
    %1572 = vdwg.mxu0
    %1573 = vmatpush.bf16.msra.mxu0 %v1005
    %1574 = vmatpush.bf16.msra.mxu0 %v1001
    %1575 = vmatpush.bf16.msra.mxu0 %v997
    %1576 = vmatpush.bf16.msra.mxu0 %v993
    %1577 = vmatpush.bf16.msra.mxu0 %v989
    %1578 = vmatpush.bf16.msra.mxu0 %v985
    %1579 = vmatpush.bf16.msra.mxu0 %v981
    %1580 = vmatpush.bf16.msra.mxu0 %v977
    %1581 = vmatmul.bf16.gmra.mxu0 %v159
    %v1582 = vpop.f32.mrf.mxu0
    %v1583 = vadd.f32 %v1570, %v1582
    %v1584 = vpop.f32.mrf.mxu0
    %1585 = vdwg.mxu0
    %1586 = vmatpush.bf16.msra.mxu0 %v1037
    %1587 = vmatpush.bf16.msra.mxu0 %v1033
    %1588 = vmatpush.bf16.msra.mxu0 %v1029
    %1589 = vmatpush.bf16.msra.mxu0 %v1025
    %1590 = vmatpush.bf16.msra.mxu0 %v1021
    %1591 = vmatpush.bf16.msra.mxu0 %v1017
    %1592 = vmatpush.bf16.msra.mxu0 %v1013
    %1593 = vmatpush.bf16.msra.mxu0 %v1009
    %1594 = vmatmul.bf16.gmra.mxu0 %v160
    %v1595 = vpop.f32.mrf.mxu0
    %v1596 = vadd.f32 %v1583, %v1595
    %v1597 = vpop.f32.mrf.mxu0
    %1598 = vdwg.mxu0
    %1599 = vmatpush.bf16.msra.mxu0 %v1069
    %1600 = vmatpush.bf16.msra.mxu0 %v1065
    %1601 = vmatpush.bf16.msra.mxu0 %v1061
    %1602 = vmatpush.bf16.msra.mxu0 %v1057
    %1603 = vmatpush.bf16.msra.mxu0 %v1053
    %1604 = vmatpush.bf16.msra.mxu0 %v1049
    %1605 = vmatpush.bf16.msra.mxu0 %v1045
    %1606 = vmatpush.bf16.msra.mxu0 %v1041
    %1607 = vmatmul.bf16.gmra.mxu0 %v161
    %v1608 = vpop.f32.mrf.mxu0
    %v1609 = vadd.f32 %v1596, %v1608
    %v1610 = vpop.f32.mrf.mxu0
    %1611 = vdwg.mxu0
    %1612 = vmatpush.bf16.msra.mxu0 %v1101
    %1613 = vmatpush.bf16.msra.mxu0 %v1097
    %1614 = vmatpush.bf16.msra.mxu0 %v1093
    %1615 = vmatpush.bf16.msra.mxu0 %v1089
    %1616 = vmatpush.bf16.msra.mxu0 %v1085
    %1617 = vmatpush.bf16.msra.mxu0 %v1081
    %1618 = vmatpush.bf16.msra.mxu0 %v1077
    %1619 = vmatpush.bf16.msra.mxu0 %v1073
    %1620 = vmatmul.bf16.gmra.mxu0 %v162
    %v1621 = vpop.f32.mrf.mxu0
    %v1622 = vadd.f32 %v1609, %v1621
    %v1623 = vpop.f32.mrf.mxu0
    %1624 = vdwg.mxu0
    %1625 = vmatpush.bf16.msra.mxu0 %v1133
    %1626 = vmatpush.bf16.msra.mxu0 %v1129
    %1627 = vmatpush.bf16.msra.mxu0 %v1125
    %1628 = vmatpush.bf16.msra.mxu0 %v1121
    %1629 = vmatpush.bf16.msra.mxu0 %v1117
    %1630 = vmatpush.bf16.msra.mxu0 %v1113
    %1631 = vmatpush.bf16.msra.mxu0 %v1109
    %1632 = vmatpush.bf16.msra.mxu0 %v1105
    %1633 = vmatmul.bf16.gmra.mxu0 %v163
    %v1634 = vpop.f32.mrf.mxu0
    %v1635 = vadd.f32 %v1622, %v1634
    %v1636 = vpop.f32.mrf.mxu0
    %1637 = vdwg.mxu0
    %v1638 = vmax.f32 %v1401, 0.0
    %v1639 = vmax.f32 %v1479, 0.0
    %v1640 = vmax.f32 %v1557, 0.0
    %v1641 = vmax.f32 %v1635, 0.0
    %v1642 = vpack.c.bf16 %v1638, %v1638
    %v1643 = vpack.c.bf16 %v1639, %v1639
    %v1644 = vpack.c.bf16 %v1640, %v1640
    %v1645 = vpack.c.bf16 %v1641, %v1641
    %v1646 = vld [vmem:[#allocation7] sm:$0xff]
    %v1647 = vld [vmem:[#allocation7 + $0x8] sm:$0xff]
    %v1648 = vld [vmem:[#allocation7 + $0x10] sm:$0xff]
    %v1649 = vld [vmem:[#allocation7 + $0x18] sm:$0xff]
    %v1650 = vld [vmem:[#allocation7 + $0x20] sm:$0xff]
    %v1651 = vld [vmem:[#allocation7 + $0x28] sm:$0xff]
    %v1652 = vld [vmem:[#allocation7 + $0x30] sm:$0xff]
    %v1653 = vld [vmem:[#allocation7 + $0x38] sm:$0xff]
    %v1654 = vld [vmem:[#allocation7 + $0x40] sm:$0xff]
    %v1655 = vld [vmem:[#allocation7 + $0x48] sm:$0xff]
    %v1656 = vld [vmem:[#allocation7 + $0x50] sm:$0xff]
    %v1657 = vld [vmem:[#allocation7 + $0x58] sm:$0xff]
    %v1658 = vld [vmem:[#allocation7 + $0x60] sm:$0xff]
    %v1659 = vld [vmem:[#allocation7 + $0x68] sm:$0xff]
    %v1660 = vld [vmem:[#allocation7 + $0x70] sm:$0xff]
    %v1661 = vld [vmem:[#allocation7 + $0x78] sm:$0xff]
    %v1662 = vld [vmem:[#allocation7 + $0x80] sm:$0xff]
    %v1663 = vld [vmem:[#allocation7 + $0x88] sm:$0xff]
    %v1664 = vld [vmem:[#allocation7 + $0x90] sm:$0xff]
    %v1665 = vld [vmem:[#allocation7 + $0x98] sm:$0xff]
    %v1666 = vld [vmem:[#allocation7 + $0xa0] sm:$0xff]
    %v1667 = vld [vmem:[#allocation7 + $0xa8] sm:$0xff]
    %v1668 = vld [vmem:[#allocation7 + $0xb0] sm:$0xff]
    %v1669 = vld [vmem:[#allocation7 + $0xb8] sm:$0xff]
    %v1670 = vld [vmem:[#allocation7 + $0xc0] sm:$0xff]
    %v1671 = vld [vmem:[#allocation7 + $0xc8] sm:$0xff]
    %v1672 = vld [vmem:[#allocation7 + $0xd0] sm:$0xff]
    %v1673 = vld [vmem:[#allocation7 + $0xd8] sm:$0xff]
    %v1674 = vld [vmem:[#allocation7 + $0xe0] sm:$0xff]
    %v1675 = vld [vmem:[#allocation7 + $0xe8] sm:$0xff]
    %v1676 = vld [vmem:[#allocation7 + $0xf0] sm:$0xff]
    %v1677 = vld [vmem:[#allocation7 + $0xf8] sm:$0xff]
    %v1678 = vld [vmem:[#allocation7 + $0x100] sm:$0xff]
    %v1679 = vld [vmem:[#allocation7 + $0x108] sm:$0xff]
    %v1680 = vld [vmem:[#allocation7 + $0x110] sm:$0xff]
    %v1681 = vld [vmem:[#allocation7 + $0x118] sm:$0xff]
    %v1682 = vld [vmem:[#allocation7 + $0x120] sm:$0xff]
    %v1683 = vld [vmem:[#allocation7 + $0x128] sm:$0xff]
    %v1684 = vld [vmem:[#allocation7 + $0x130] sm:$0xff]
    %v1685 = vld [vmem:[#allocation7 + $0x138] sm:$0xff]
    %v1686 = vld [vmem:[#allocation7 + $0x140] sm:$0xff]
    %v1687 = vld [vmem:[#allocation7 + $0x148] sm:$0xff]
    %v1688 = vld [vmem:[#allocation7 + $0x150] sm:$0xff]
    %v1689 = vld [vmem:[#allocation7 + $0x158] sm:$0xff]
    %v1690 = vld [vmem:[#allocation7 + $0x160] sm:$0xff]
    %v1691 = vld [vmem:[#allocation7 + $0x168] sm:$0xff]
    %v1692 = vld [vmem:[#allocation7 + $0x170] sm:$0xff]
    %v1693 = vld [vmem:[#allocation7 + $0x178] sm:$0xff]
    %v1694 = vld [vmem:[#allocation7 + $0x180] sm:$0xff]
    %v1695 = vld [vmem:[#allocation7 + $0x188] sm:$0xff]
    %v1696 = vld [vmem:[#allocation7 + $0x190] sm:$0xff]
    %v1697 = vld [vmem:[#allocation7 + $0x198] sm:$0xff]
    %v1698 = vld [vmem:[#allocation7 + $0x1a0] sm:$0xff]
    %v1699 = vld [vmem:[#allocation7 + $0x1a8] sm:$0xff]
    %v1700 = vld [vmem:[#allocation7 + $0x1b0] sm:$0xff]
    %v1701 = vld [vmem:[#allocation7 + $0x1b8] sm:$0xff]
    %v1702 = vld [vmem:[#allocation7 + $0x1c0] sm:$0xff]
    %v1703 = vld [vmem:[#allocation7 + $0x1c8] sm:$0xff]
    %v1704 = vld [vmem:[#allocation7 + $0x1d0] sm:$0xff]
    %v1705 = vld [vmem:[#allocation7 + $0x1d8] sm:$0xff]
    %v1706 = vld [vmem:[#allocation7 + $0x1e0] sm:$0xff]
    %v1707 = vld [vmem:[#allocation7 + $0x1e8] sm:$0xff]
    %v1708 = vld [vmem:[#allocation7 + $0x1f0] sm:$0xff]
    %v1709 = vld [vmem:[#allocation7 + $0x1f8] sm:$0xff]
    %v1710 = vld [vmem:[#allocation8] sm:$0x3]
    %v1712 = vperm.slane %v1710, 0
    %v1713 = vperm.slane %v1710, 1
    %v1780 = vunpack.c.l.b16 %v1646
    %v1781 = vunpack.c.h.b16 %v1646
    %v1782 = vunpack.c.l.b16 %v1647
    %v1783 = vunpack.c.h.b16 %v1647
    %v1784 = vunpack.c.l.b16 %v1648
    %v1785 = vunpack.c.h.b16 %v1648
    %v1786 = vunpack.c.l.b16 %v1649
    %v1787 = vunpack.c.h.b16 %v1649
    %v1788 = vunpack.c.l.b16 %v1650
    %v1789 = vunpack.c.h.b16 %v1650
    %v1790 = vunpack.c.l.b16 %v1651
    %v1791 = vunpack.c.h.b16 %v1651
    %v1792 = vunpack.c.l.b16 %v1652
    %v1793 = vunpack.c.h.b16 %v1652
    %v1794 = vunpack.c.l.b16 %v1653
    %v1795 = vunpack.c.h.b16 %v1653
    %v1796 = vunpack.c.l.b16 %v1654
    %v1797 = vunpack.c.h.b16 %v1654
    %v1798 = vunpack.c.l.b16 %v1655
    %v1799 = vunpack.c.h.b16 %v1655
    %v1800 = vunpack.c.l.b16 %v1656
    %v1801 = vunpack.c.h.b16 %v1656
    %v1802 = vunpack.c.l.b16 %v1657
    %v1803 = vunpack.c.h.b16 %v1657
    %v1804 = vunpack.c.l.b16 %v1658
    %v1805 = vunpack.c.h.b16 %v1658
    %v1806 = vunpack.c.l.b16 %v1659
    %v1807 = vunpack.c.h.b16 %v1659
    %v1808 = vunpack.c.l.b16 %v1660
    %v1809 = vunpack.c.h.b16 %v1660
    %v1810 = vunpack.c.l.b16 %v1661
    %v1811 = vunpack.c.h.b16 %v1661
    %v1812 = vunpack.c.l.b16 %v1662
    %v1813 = vunpack.c.h.b16 %v1662
    %v1814 = vunpack.c.l.b16 %v1663
    %v1815 = vunpack.c.h.b16 %v1663
    %v1816 = vunpack.c.l.b16 %v1664
    %v1817 = vunpack.c.h.b16 %v1664
    %v1818 = vunpack.c.l.b16 %v1665
    %v1819 = vunpack.c.h.b16 %v1665
    %v1820 = vunpack.c.l.b16 %v1666
    %v1821 = vunpack.c.h.b16 %v1666
    %v1822 = vunpack.c.l.b16 %v1667
    %v1823 = vunpack.c.h.b16 %v1667
    %v1824 = vunpack.c.l.b16 %v1668
    %v1825 = vunpack.c.h.b16 %v1668
    %v1826 = vunpack.c.l.b16 %v1669
    %v1827 = vunpack.c.h.b16 %v1669
    %v1828 = vunpack.c.l.b16 %v1670
    %v1829 = vunpack.c.h.b16 %v1670
    %v1830 = vunpack.c.l.b16 %v1671
    %v1831 = vunpack.c.h.b16 %v1671
    %v1832 = vunpack.c.l.b16 %v1672
    %v1833 = vunpack.c.h.b16 %v1672
    %v1834 = vunpack.c.l.b16 %v1673
    %v1835 = vunpack.c.h.b16 %v1673
    %v1836 = vunpack.c.l.b16 %v1674
    %v1837 = vunpack.c.h.b16 %v1674
    %v1838 = vunpack.c.l.b16 %v1675
    %v1839 = vunpack.c.h.b16 %v1675
    %v1840 = vunpack.c.l.b16 %v1676
    %v1841 = vunpack.c.h.b16 %v1676
    %v1842 = vunpack.c.l.b16 %v1677
    %v1843 = vunpack.c.h.b16 %v1677
    %v1844 = vunpack.c.l.b16 %v1678
    %v1845 = vunpack.c.h.b16 %v1678
    %v1846 = vunpack.c.l.b16 %v1679
    %v1847 = vunpack.c.h.b16 %v1679
    %v1848 = vunpack.c.l.b16 %v1680
    %v1849 = vunpack.c.h.b16 %v1680
    %v1850 = vunpack.c.l.b16 %v1681
    %v1851 = vunpack.c.h.b16 %v1681
    %v1852 = vunpack.c.l.b16 %v1682
    %v1853 = vunpack.c.h.b16 %v1682
    %v1854 = vunpack.c.l.b16 %v1683
    %v1855 = vunpack.c.h.b16 %v1683
    %v1856 = vunpack.c.l.b16 %v1684
    %v1857 = vunpack.c.h.b16 %v1684
    %v1858 = vunpack.c.l.b16 %v1685
    %v1859 = vunpack.c.h.b16 %v1685
    %v1860 = vunpack.c.l.b16 %v1686
    %v1861 = vunpack.c.h.b16 %v1686
    %v1862 = vunpack.c.l.b16 %v1687
    %v1863 = vunpack.c.h.b16 %v1687
    %v1864 = vunpack.c.l.b16 %v1688
    %v1865 = vunpack.c.h.b16 %v1688
    %v1866 = vunpack.c.l.b16 %v1689
    %v1867 = vunpack.c.h.b16 %v1689
    %v1868 = vunpack.c.l.b16 %v1690
    %v1869 = vunpack.c.h.b16 %v1690
    %v1870 = vunpack.c.l.b16 %v1691
    %v1871 = vunpack.c.h.b16 %v1691
    %v1872 = vunpack.c.l.b16 %v1692
    %v1873 = vunpack.c.h.b16 %v1692
    %v1874 = vunpack.c.l.b16 %v1693
    %v1875 = vunpack.c.h.b16 %v1693
    %v1876 = vunpack.c.l.b16 %v1694
    %v1877 = vunpack.c.h.b16 %v1694
    %v1878 = vunpack.c.l.b16 %v1695
    %v1879 = vunpack.c.h.b16 %v1695
    %v1880 = vunpack.c.l.b16 %v1696
    %v1881 = vunpack.c.h.b16 %v1696
    %v1882 = vunpack.c.l.b16 %v1697
    %v1883 = vunpack.c.h.b16 %v1697
    %v1884 = vunpack.c.l.b16 %v1698
    %v1885 = vunpack.c.h.b16 %v1698
    %v1886 = vunpack.c.l.b16 %v1699
    %v1887 = vunpack.c.h.b16 %v1699
    %v1888 = vunpack.c.l.b16 %v1700
    %v1889 = vunpack.c.h.b16 %v1700
    %v1890 = vunpack.c.l.b16 %v1701
    %v1891 = vunpack.c.h.b16 %v1701
    %v1892 = vunpack.c.l.b16 %v1702
    %v1893 = vunpack.c.h.b16 %v1702
    %v1894 = vunpack.c.l.b16 %v1703
    %v1895 = vunpack.c.h.b16 %v1703
    %v1896 = vunpack.c.l.b16 %v1704
    %v1897 = vunpack.c.h.b16 %v1704
    %v1898 = vunpack.c.l.b16 %v1705
    %v1899 = vunpack.c.h.b16 %v1705
    %v1900 = vunpack.c.l.b16 %v1706
    %v1901 = vunpack.c.h.b16 %v1706
    %v1902 = vunpack.c.l.b16 %v1707
    %v1903 = vunpack.c.h.b16 %v1707
    %v1904 = vunpack.c.l.b16 %v1708
    %v1905 = vunpack.c.h.b16 %v1708
    %v1906 = vunpack.c.l.b16 %v1709
    %v1907 = vunpack.c.h.b16 %v1709
    %v1908 = vpack.c.b16 %v1782, %v1780
    %v1909 = vpack.c.b16 %v1783, %v1781
    %v1910 = vpack.c.b16 %v1786, %v1784
    %v1911 = vpack.c.b16 %v1787, %v1785
    %v1912 = vpack.c.b16 %v1790, %v1788
    %v1913 = vpack.c.b16 %v1791, %v1789
    %v1914 = vpack.c.b16 %v1794, %v1792
    %v1915 = vpack.c.b16 %v1795, %v1793
    %v1916 = vpack.c.b16 %v1798, %v1796
    %v1917 = vpack.c.b16 %v1799, %v1797
    %v1918 = vpack.c.b16 %v1802, %v1800
    %v1919 = vpack.c.b16 %v1803, %v1801
    %v1920 = vpack.c.b16 %v1806, %v1804
    %v1921 = vpack.c.b16 %v1807, %v1805
    %v1922 = vpack.c.b16 %v1810, %v1808
    %v1923 = vpack.c.b16 %v1811, %v1809
    %v1924 = vpack.c.b16 %v1814, %v1812
    %v1925 = vpack.c.b16 %v1815, %v1813
    %v1926 = vpack.c.b16 %v1818, %v1816
    %v1927 = vpack.c.b16 %v1819, %v1817
    %v1928 = vpack.c.b16 %v1822, %v1820
    %v1929 = vpack.c.b16 %v1823, %v1821
    %v1930 = vpack.c.b16 %v1826, %v1824
    %v1931 = vpack.c.b16 %v1827, %v1825
    %v1932 = vpack.c.b16 %v1830, %v1828
    %v1933 = vpack.c.b16 %v1831, %v1829
    %v1934 = vpack.c.b16 %v1834, %v1832
    %v1935 = vpack.c.b16 %v1835, %v1833
    %v1936 = vpack.c.b16 %v1838, %v1836
    %v1937 = vpack.c.b16 %v1839, %v1837
    %v1938 = vpack.c.b16 %v1842, %v1840
    %v1939 = vpack.c.b16 %v1843, %v1841
    %v1940 = vpack.c.b16 %v1846, %v1844
    %v1941 = vpack.c.b16 %v1847, %v1845
    %v1942 = vpack.c.b16 %v1850, %v1848
    %v1943 = vpack.c.b16 %v1851, %v1849
    %v1944 = vpack.c.b16 %v1854, %v1852
    %v1945 = vpack.c.b16 %v1855, %v1853
    %v1946 = vpack.c.b16 %v1858, %v1856
    %v1947 = vpack.c.b16 %v1859, %v1857
    %v1948 = vpack.c.b16 %v1862, %v1860
    %v1949 = vpack.c.b16 %v1863, %v1861
    %v1950 = vpack.c.b16 %v1866, %v1864
    %v1951 = vpack.c.b16 %v1867, %v1865
    %v1952 = vpack.c.b16 %v1870, %v1868
    %v1953 = vpack.c.b16 %v1871, %v1869
    %v1954 = vpack.c.b16 %v1874, %v1872
    %v1955 = vpack.c.b16 %v1875, %v1873
    %v1956 = vpack.c.b16 %v1878, %v1876
    %v1957 = vpack.c.b16 %v1879, %v1877
    %v1958 = vpack.c.b16 %v1882, %v1880
    %v1959 = vpack.c.b16 %v1883, %v1881
    %v1960 = vpack.c.b16 %v1886, %v1884
    %v1961 = vpack.c.b16 %v1887, %v1885
    %v1962 = vpack.c.b16 %v1890, %v1888
    %v1963 = vpack.c.b16 %v1891, %v1889
    %v1964 = vpack.c.b16 %v1894, %v1892
    %v1965 = vpack.c.b16 %v1895, %v1893
    %v1966 = vpack.c.b16 %v1898, %v1896
    %v1967 = vpack.c.b16 %v1899, %v1897
    %v1968 = vpack.c.b16 %v1902, %v1900
    %v1969 = vpack.c.b16 %v1903, %v1901
    %v1970 = vpack.c.b16 %v1906, %v1904
    %v1971 = vpack.c.b16 %v1907, %v1905
    %2036 = vmatpush.bf16.msra.mxu0 %v1922
    %2037 = vmatpush.bf16.msra.mxu0 %v1920
    %2038 = vmatpush.bf16.msra.mxu0 %v1918
    %2039 = vmatpush.bf16.msra.mxu0 %v1916
    %2040 = vmatpush.bf16.msra.mxu0 %v1914
    %2041 = vmatpush.bf16.msra.mxu0 %v1912
    %2042 = vmatpush.bf16.msra.mxu0 %v1910
    %2043 = vmatpush.bf16.msra.mxu0 %v1908
    %2044 = vmatmul.bf16.gmra.mxu0 %v1642
    %v2045 = vpop.f32.mrf.mxu0
    %v2046 = vadd.f32 %v1712, %v2045
    %v2047 = vpop.f32.mrf.mxu0
    %2048 = vdwg.mxu0
    %2049 = vmatpush.bf16.msra.mxu0 %v1938
    %2050 = vmatpush.bf16.msra.mxu0 %v1936
    %2051 = vmatpush.bf16.msra.mxu0 %v1934
    %2052 = vmatpush.bf16.msra.mxu0 %v1932
    %2053 = vmatpush.bf16.msra.mxu0 %v1930
    %2054 = vmatpush.bf16.msra.mxu0 %v1928
    %2055 = vmatpush.bf16.msra.mxu0 %v1926
    %2056 = vmatpush.bf16.msra.mxu0 %v1924
    %2057 = vmatmul.bf16.gmra.mxu0 %v1643
    %v2058 = vpop.f32.mrf.mxu0
    %v2059 = vadd.f32 %v2046, %v2058
    %v2060 = vpop.f32.mrf.mxu0
    %2061 = vdwg.mxu0
    %2062 = vmatpush.bf16.msra.mxu0 %v1954
    %2063 = vmatpush.bf16.msra.mxu0 %v1952
    %2064 = vmatpush.bf16.msra.mxu0 %v1950
    %2065 = vmatpush.bf16.msra.mxu0 %v1948
    %2066 = vmatpush.bf16.msra.mxu0 %v1946
    %2067 = vmatpush.bf16.msra.mxu0 %v1944
    %2068 = vmatpush.bf16.msra.mxu0 %v1942
    %2069 = vmatpush.bf16.msra.mxu0 %v1940
    %2070 = vmatmul.bf16.gmra.mxu0 %v1644
    %v2071 = vpop.f32.mrf.mxu0
    %v2072 = vadd.f32 %v2059, %v2071
    %v2073 = vpop.f32.mrf.mxu0
    %2074 = vdwg.mxu0
    %2075 = vmatpush.bf16.msra.mxu0 %v1970
    %2076 = vmatpush.bf16.msra.mxu0 %v1968
    %2077 = vmatpush.bf16.msra.mxu0 %v1966
    %2078 = vmatpush.bf16.msra.mxu0 %v1964
    %2079 = vmatpush.bf16.msra.mxu0 %v1962
    %2080 = vmatpush.bf16.msra.mxu0 %v1960
    %2081 = vmatpush.bf16.msra.mxu0 %v1958
    %2082 = vmatpush.bf16.msra.mxu0 %v1956
    %2083 = vmatmul.bf16.gmra.mxu0 %v1645
    %v2084 = vpop.f32.mrf.mxu0
    %v2085 = vadd.f32 %v2072, %v2084
    %v2086 = vpop.f32.mrf.mxu0
    %2087 = vdwg.mxu0
    %2088 = vmatpush.bf16.msra.mxu0 %v1923
    %2089 = vmatpush.bf16.msra.mxu0 %v1921
    %2090 = vmatpush.bf16.msra.mxu0 %v1919
    %2091 = vmatpush.bf16.msra.mxu0 %v1917
    %2092 = vmatpush.bf16.msra.mxu0 %v1915
    %2093 = vmatpush.bf16.msra.mxu0 %v1913
    %2094 = vmatpush.bf16.msra.mxu0 %v1911
    %2095 = vmatpush.bf16.msra.mxu0 %v1909
    %2096 = vmatmul.bf16.gmra.mxu0 %v1642
    %v2097 = vpop.f32.mrf.mxu0
    %v2098 = vadd.f32 %v1713, %v2097
    %v2099 = vpop.f32.mrf.mxu0
    %2100 = vdwg.mxu0
    %2101 = vmatpush.bf16.msra.mxu0 %v1939
    %2102 = vmatpush.bf16.msra.mxu0 %v1937
    %2103 = vmatpush.bf16.msra.mxu0 %v1935
    %2104 = vmatpush.bf16.msra.mxu0 %v1933
    %2105 = vmatpush.bf16.msra.mxu0 %v1931
    %2106 = vmatpush.bf16.msra.mxu0 %v1929
    %2107 = vmatpush.bf16.msra.mxu0 %v1927
    %2108 = vmatpush.bf16.msra.mxu0 %v1925
    %2109 = vmatmul.bf16.gmra.mxu0 %v1643
    %v2110 = vpop.f32.mrf.mxu0
    %v2111 = vadd.f32 %v2098, %v2110
    %v2112 = vpop.f32.mrf.mxu0
    %2113 = vdwg.mxu0
    %2114 = vmatpush.bf16.msra.mxu0 %v1955
    %2115 = vmatpush.bf16.msra.mxu0 %v1953
    %2116 = vmatpush.bf16.msra.mxu0 %v1951
    %2117 = vmatpush.bf16.msra.mxu0 %v1949
    %2118 = vmatpush.bf16.msra.mxu0 %v1947
    %2119 = vmatpush.bf16.msra.mxu0 %v1945
    %2120 = vmatpush.bf16.msra.mxu0 %v1943
    %2121 = vmatpush.bf16.msra.mxu0 %v1941
    %2122 = vmatmul.bf16.gmra.mxu0 %v1644
    %v2123 = vpop.f32.mrf.mxu0
    %v2124 = vadd.f32 %v2111, %v2123
    %v2125 = vpop.f32.mrf.mxu0
    %2126 = vdwg.mxu0
    %2127 = vmatpush.bf16.msra.mxu0 %v1971
    %2128 = vmatpush.bf16.msra.mxu0 %v1969
    %2129 = vmatpush.bf16.msra.mxu0 %v1967
    %2130 = vmatpush.bf16.msra.mxu0 %v1965
    %2131 = vmatpush.bf16.msra.mxu0 %v1963
    %2132 = vmatpush.bf16.msra.mxu0 %v1961
    %2133 = vmatpush.bf16.msra.mxu0 %v1959
    %2134 = vmatpush.bf16.msra.mxu0 %v1957
    %2135 = vmatmul.bf16.gmra.mxu0 %v1645
    %v2136 = vpop.f32.mrf.mxu0
    %v2137 = vadd.f32 %v2124, %v2136
    %v2138 = vpop.f32.mrf.mxu0
    %2139 = vdwg.mxu0
    %v2140 = vmax.f32 %v2085, 0.0
    %v2141 = vmax.f32 %v2137, 0.0
    %v2142 = vpack.c.bf16 %v2140, %v2140
    %v2143 = vpack.c.bf16 %v2141, %v2141
    %v2144 = vld [vmem:[%s5] sm:$0xf]
    %v2145 = vld [vmem:[%s5 + $0x4] sm:$0xf]
    %v2146 = vld [vmem:[%s5 + $0x8] sm:$0xf]
    %v2147 = vld [vmem:[%s5 + $0xc] sm:$0xf]
    %v2148 = vld [vmem:[%s5 + $0x10] sm:$0xf]
    %v2149 = vld [vmem:[%s5 + $0x14] sm:$0xf]
    %v2150 = vld [vmem:[%s5 + $0x18] sm:$0xf]
    %v2151 = vld [vmem:[%s5 + $0x1c] sm:$0xf]
    %v2152 = vld [vmem:[%s5 + $0x20] sm:$0xf]
    %v2153 = vld [vmem:[%s5 + $0x24] sm:$0xf]
    %v2154 = vld [vmem:[%s5 + $0x28] sm:$0xf]
    %v2155 = vld [vmem:[%s5 + $0x2c] sm:$0xf]
    %v2156 = vld [vmem:[%s5 + $0x30] sm:$0xf]
    %v2157 = vld [vmem:[%s5 + $0x34] sm:$0xf]
    %v2158 = vld [vmem:[%s5 + $0x38] sm:$0xf]
    %v2159 = vld [vmem:[%s5 + $0x3c] sm:$0xf]
    %v2160 = vld [vmem:[%s5 + $0x40] sm:$0xf]
    %v2161 = vld [vmem:[%s5 + $0x44] sm:$0xf]
    %v2162 = vld [vmem:[%s5 + $0x48] sm:$0xf]
    %v2163 = vld [vmem:[%s5 + $0x4c] sm:$0xf]
    %v2164 = vld [vmem:[%s5 + $0x50] sm:$0xf]
    %v2165 = vld [vmem:[%s5 + $0x54] sm:$0xf]
    %v2166 = vld [vmem:[%s5 + $0x58] sm:$0xf]
    %v2167 = vld [vmem:[%s5 + $0x5c] sm:$0xf]
    %v2168 = vld [vmem:[%s5 + $0x60] sm:$0xf]
    %v2169 = vld [vmem:[%s5 + $0x64] sm:$0xf]
    %v2170 = vld [vmem:[%s5 + $0x68] sm:$0xf]
    %v2171 = vld [vmem:[%s5 + $0x6c] sm:$0xf]
    %v2172 = vld [vmem:[%s5 + $0x70] sm:$0xf]
    %v2173 = vld [vmem:[%s5 + $0x74] sm:$0xf]
    %v2174 = vld [vmem:[%s5 + $0x78] sm:$0xf]
    %v2175 = vld [vmem:[%s5 + $0x7c] sm:$0xf]
    %v2176 = vld [vmem:[#allocation10] sm:$0x1]
    %v2178 = vperm.slane %v2176, 0
    %v2212 = vunpack.c.l.b16 %v2144
    %v2213 = vunpack.c.l.b16 %v2145
    %v2214 = vunpack.c.l.b16 %v2146
    %v2215 = vunpack.c.l.b16 %v2147
    %v2216 = vunpack.c.l.b16 %v2148
    %v2217 = vunpack.c.l.b16 %v2149
    %v2218 = vunpack.c.l.b16 %v2150
    %v2219 = vunpack.c.l.b16 %v2151
    %v2220 = vunpack.c.l.b16 %v2152
    %v2221 = vunpack.c.l.b16 %v2153
    %v2222 = vunpack.c.l.b16 %v2154
    %v2223 = vunpack.c.l.b16 %v2155
    %v2224 = vunpack.c.l.b16 %v2156
    %v2225 = vunpack.c.l.b16 %v2157
    %v2226 = vunpack.c.l.b16 %v2158
    %v2227 = vunpack.c.l.b16 %v2159
    %v2228 = vunpack.c.l.b16 %v2160
    %v2229 = vunpack.c.l.b16 %v2161
    %v2230 = vunpack.c.l.b16 %v2162
    %v2231 = vunpack.c.l.b16 %v2163
    %v2232 = vunpack.c.l.b16 %v2164
    %v2233 = vunpack.c.l.b16 %v2165
    %v2234 = vunpack.c.l.b16 %v2166
    %v2235 = vunpack.c.l.b16 %v2167
    %v2236 = vunpack.c.l.b16 %v2168
    %v2237 = vunpack.c.l.b16 %v2169
    %v2238 = vunpack.c.l.b16 %v2170
    %v2239 = vunpack.c.l.b16 %v2171
    %v2240 = vunpack.c.l.b16 %v2172
    %v2241 = vunpack.c.l.b16 %v2173
    %v2242 = vunpack.c.l.b16 %v2174
    %v2243 = vunpack.c.l.b16 %v2175
    %v2244 = vpack.c.b16 %v2213, %v2212
    %v2245 = vpack.c.b16 %v2215, %v2214
    %v2246 = vpack.c.b16 %v2217, %v2216
    %v2247 = vpack.c.b16 %v2219, %v2218
    %v2248 = vpack.c.b16 %v2221, %v2220
    %v2249 = vpack.c.b16 %v2223, %v2222
    %v2250 = vpack.c.b16 %v2225, %v2224
    %v2251 = vpack.c.b16 %v2227, %v2226
    %v2252 = vpack.c.b16 %v2229, %v2228
    %v2253 = vpack.c.b16 %v2231, %v2230
    %v2254 = vpack.c.b16 %v2233, %v2232
    %v2255 = vpack.c.b16 %v2235, %v2234
    %v2256 = vpack.c.b16 %v2237, %v2236
    %v2257 = vpack.c.b16 %v2239, %v2238
    %v2258 = vpack.c.b16 %v2241, %v2240
    %v2259 = vpack.c.b16 %v2243, %v2242
    %2276 = vmatpush.bf16.msra.mxu0 %v2251
    %2277 = vmatpush.bf16.msra.mxu0 %v2250
    %2278 = vmatpush.bf16.msra.mxu0 %v2249
    %2279 = vmatpush.bf16.msra.mxu0 %v2248
    %2280 = vmatpush.bf16.msra.mxu0 %v2247
    %2281 = vmatpush.bf16.msra.mxu0 %v2246
    %2282 = vmatpush.bf16.msra.mxu0 %v2245
    %2283 = vmatpush.bf16.msra.mxu0 %v2244
    %2284 = vmatmul.bf16.gmra.mxu0 %v2142
    %v2285 = vpop.f32.mrf.mxu0
    %v2286 = vadd.f32 %v2178, %v2285
    %v2287 = vpop.f32.mrf.mxu0
    %2288 = vdwg.mxu0
    %2289 = vmatpush.bf16.msra.mxu0 %v2259
    %2290 = vmatpush.bf16.msra.mxu0 %v2258
    %2291 = vmatpush.bf16.msra.mxu0 %v2257
    %2292 = vmatpush.bf16.msra.mxu0 %v2256
    %2293 = vmatpush.bf16.msra.mxu0 %v2255
    %2294 = vmatpush.bf16.msra.mxu0 %v2254
    %2295 = vmatpush.bf16.msra.mxu0 %v2253
    %2296 = vmatpush.bf16.msra.mxu0 %v2252
    %2297 = vmatmul.bf16.gmra.mxu0 %v2143
    %v2298 = vpop.f32.mrf.mxu0
    %v2299 = vadd.f32 %v2286, %v2298
    %v2300 = vpop.f32.mrf.mxu0
    %2301 = vdwg.mxu0
    %v2302 = vmax.f32 %v2299, 0.0
    %v2303 = vpack.c.bf16 %v2302, %v2302
    %v2304 = vld [vmem:[%s7] sm:$0xf]
    %v2305 = vld [vmem:[%s7 + $0x4] sm:$0xf]
    %v2306 = vld [vmem:[%s7 + $0x8] sm:$0xf]
    %v2307 = vld [vmem:[%s7 + $0xc] sm:$0xf]
    %v2308 = vld [vmem:[%s7 + $0x10] sm:$0xf]
    %v2309 = vld [vmem:[%s7 + $0x14] sm:$0xf]
    %v2310 = vld [vmem:[%s7 + $0x18] sm:$0xf]
    %v2311 = vld [vmem:[%s7 + $0x1c] sm:$0xf]
    %v2312 = vld [vmem:[%s7 + $0x20] sm:$0xf]
    %v2313 = vld [vmem:[%s7 + $0x24] sm:$0xf]
    %v2314 = vld [vmem:[%s7 + $0x28] sm:$0xf]
    %v2315 = vld [vmem:[%s7 + $0x2c] sm:$0xf]
    %v2316 = vld [vmem:[%s7 + $0x30] sm:$0xf]
    %v2317 = vld [vmem:[%s7 + $0x34] sm:$0xf]
    %v2318 = vld [vmem:[%s7 + $0x38] sm:$0xf]
    %v2319 = vld [vmem:[%s7 + $0x3c] sm:$0xf]
    %v2320 = vld [vmem:[#allocation11] sm:$0x1]
    %v2322 = vperm.slane %v2320, 0
    %v2340 = vunpack.c.l.b16 %v2304
    %v2341 = vunpack.c.l.b16 %v2305
    %v2342 = vunpack.c.l.b16 %v2306
    %v2343 = vunpack.c.l.b16 %v2307
    %v2344 = vunpack.c.l.b16 %v2308
    %v2345 = vunpack.c.l.b16 %v2309
    %v2346 = vunpack.c.l.b16 %v2310
    %v2347 = vunpack.c.l.b16 %v2311
    %v2348 = vunpack.c.l.b16 %v2312
    %v2349 = vunpack.c.l.b16 %v2313
    %v2350 = vunpack.c.l.b16 %v2314
    %v2351 = vunpack.c.l.b16 %v2315
    %v2352 = vunpack.c.l.b16 %v2316
    %v2353 = vunpack.c.l.b16 %v2317
    %v2354 = vunpack.c.l.b16 %v2318
    %v2355 = vunpack.c.l.b16 %v2319
    %v2356 = vpack.c.b16 %v2341, %v2340
    %v2357 = vpack.c.b16 %v2343, %v2342
    %v2358 = vpack.c.b16 %v2345, %v2344
    %v2359 = vpack.c.b16 %v2347, %v2346
    %v2360 = vpack.c.b16 %v2349, %v2348
    %v2361 = vpack.c.b16 %v2351, %v2350
    %v2362 = vpack.c.b16 %v2353, %v2352
    %v2363 = vpack.c.b16 %v2355, %v2354
    %2372 = vmatpush.bf16.msra.mxu0 %v2363
    %2373 = vmatpush.bf16.msra.mxu0 %v2362
    %2374 = vmatpush.bf16.msra.mxu0 %v2361
    %2375 = vmatpush.bf16.msra.mxu0 %v2360
    %2376 = vmatpush.bf16.msra.mxu0 %v2359
    %2377 = vmatpush.bf16.msra.mxu0 %v2358
    %2378 = vmatpush.bf16.msra.mxu0 %v2357
    %2379 = vmatpush.bf16.msra.mxu0 %v2356
    %2380 = vmatmul.bf16.gmra.mxu0 %v2303
    %v2381 = vpop.f32.mrf.mxu0
    %v2382 = vadd.f32 %v2322, %v2381
    %v2383 = vpop.f32.mrf.mxu0
    %2384 = vdwg.mxu0
    %v2385 = vmax.f32 %v2382, 0.0
    %v2386 = vpack.c.bf16 %v2385, %v2385
    %v2387 = vld [vmem:[%s9] sm:$0xf]
    %v2388 = vld [vmem:[%s9 + $0x4] sm:$0xf]
    %v2389 = vld [vmem:[%s9 + $0x8] sm:$0xf]
    %v2390 = vld [vmem:[%s9 + $0xc] sm:$0xf]
    %v2391 = vld [vmem:[%s9 + $0x10] sm:$0xf]
    %v2392 = vld [vmem:[%s9 + $0x14] sm:$0xf]
    %v2393 = vld [vmem:[%s9 + $0x18] sm:$0xf]
    %v2394 = vld [vmem:[%s9 + $0x1c] sm:$0xf]
    %v2395 = vld [vmem:[#allocation13] sm:$0x1]
    %v2397 = vperm.slane %v2395, 0
    %v2407 = vunpack.c.l.b16 %v2387
    %v2408 = vunpack.c.l.b16 %v2388
    %v2409 = vunpack.c.l.b16 %v2389
    %v2410 = vunpack.c.l.b16 %v2390
    %v2411 = vunpack.c.l.b16 %v2391
    %v2412 = vunpack.c.l.b16 %v2392
    %v2413 = vunpack.c.l.b16 %v2393
    %v2414 = vunpack.c.l.b16 %v2394
    %v2415 = vpack.c.b16 %v2408, %v2407
    %v2416 = vpack.c.b16 %v2410, %v2409
    %v2417 = vpack.c.b16 %v2412, %v2411
    %v2418 = vpack.c.b16 %v2414, %v2413
    %vm2423 = vcmask 523264
    %v2425 = vsel %vm2423, %v2386, 0
    %2427 = vmatpush.bf16.msra.mxu0 0
    %2428 = vmatpush.bf16.msra.mxu0 0
    %2429 = vmatpush.bf16.msra.mxu0 0
    %2430 = vmatpush.bf16.msra.mxu0 0
    %2431 = vmatpush.bf16.msra.mxu0 %v2418
    %2432 = vmatpush.bf16.msra.mxu0 %v2417
    %2433 = vmatpush.bf16.msra.mxu0 %v2416
    %2434 = vmatpush.bf16.msra.mxu0 %v2415
    %2435 = vmatmul.bf16.gmra.mxu0 %v2425
    %v2436 = vpop.f32.mrf.mxu0
    %v2437 = vadd.f32 %v2397, %v2436
    %v2438 = vpop.f32.mrf.mxu0
    %2439 = vdwg.mxu0
    %v2440 = vmax.f32 %v2437, 0.0
    %v2441 = vpack.c.bf16 %v2440, %v2440
    %v2442 = vld [vmem:[%s11] sm:$0xf]
    %v2443 = vld [vmem:[%s11 + $0x4] sm:$0xf]
    %v2444 = vld [vmem:[%s12] sm:$0x1]
    %v2446 = vperm.slane %v2444, 0
    %v2450 = vunpack.c.l.b16 %v2442
    %v2451 = vunpack.c.l.b16 %v2443
    %v2452 = vpack.c.b16 %v2451, %v2450
    %vm2454 = vcmask 130048
    %v2456 = vsel %vm2454, %v2441, 0
    %2458 = vmatpush.bf16.msra.mxu0 0
    %2459 = vmatpush.bf16.msra.mxu0 0
    %2460 = vmatpush.bf16.msra.mxu0 0
    %2461 = vmatpush.bf16.msra.mxu0 0
    %2462 = vmatpush.bf16.msra.mxu0 0
    %2463 = vmatpush.bf16.msra.mxu0 0
    %2464 = vmatpush.bf16.msra.mxu0 0
    %2465 = vmatpush.bf16.msra.mxu0 %v2452
    %2466 = vmatmul.bf16.gmra.mxu0 %v2456
    %v2467 = vpop.f32.mrf.mxu0
    %v2468 = vadd.f32 %v2446, %v2467
    %v2469 = vpop.f32.mrf.mxu0
    %2470 = vdwg.mxu0
    %v2471 = vmax.f32 %v2468, 0.0
    %v2472 = vpack.c.bf16 %v2471, %v2471
    %v2473 = vunpack.c.l.bf16 %v2472
    %v2474 = vld [vmem:[%s13] sm:$0xff]
    %v2475 = vld [vmem:[#allocation2] sm:$0x1]
    %v2477 = vperm.slane %v2475, 0
    %vm2479 = vcmask 64512
    %v2481 = vsel %vm2479, %v2473, 0
    %2483 = vmatpush.msra.mxu0 0.0
    %2484 = vmatpush.msra.mxu0 0.0
    %2485 = vmatpush.msra.mxu0 0.0
    %2486 = vmatpush.msra.mxu0 0.0
    %2487 = vmatpush.msra.mxu0 0.0
    %2488 = vmatpush.msra.mxu0 0.0
    %2489 = vmatpush.msra.mxu0 0.0
    %2490 = vmatpush.msra.mxu0 0.0
    %2491 = vmatpush.msra.mxu0 0.0
    %2492 = vmatpush.msra.mxu0 0.0
    %2493 = vmatpush.msra.mxu0 0.0
    %2494 = vmatpush.msra.mxu0 0.0
    %2495 = vmatpush.msra.mxu0 0.0
    %2496 = vmatpush.msra.mxu0 0.0
    %2497 = vmatpush.msra.mxu0 0.0
    %2498 = vmatpush.msra.mxu0 %v2474
    %2499 = vmatmul.f32.gmra.mxu0 %v2481
    %v2500 = vpop.f32.mrf.mxu0
    %v2501 = vadd.f32 %v2477, %v2500
    %2502 = vdwg.mxu0
    %v2503 = vand.u32 2147483647, %v2501
    %v2504 = vsub.f32 0.0, %v2503
    %v2505 = vmul.f32 %v2504, 1.442695
    %v2506 = vpow.pop %v2505
    %v2507 = vadd.f32 %v2506, 1.0
    %v2508 = vrcp.pop %v2507
    %vm2509 = vcmp.ge.f32.partialorder %v2501, 0.0
    %v2510 = vmul.f32 %v2506, %v2508
    %v2511 = vsel %vm2509, %v2510, %v2508
    %v2512 = vsub.f32 1.0, %v2511
    %v2513 = vlaneseq
    %v2514 = vand.u32 %v2513, 127
    %vm2515 = vcmp.eq.s32.totalorder %v2514, 0
    %2517 = vset.pattern.permute.xlu0 0
    %2518 = vperm.xlu0 %2517, %v2512
    %v2519 = vpop.permute.xlu0 %2518
    %2522 = vset.pattern.permute.xlu0 0
    %2523 = vperm.xlu0 %2522, %v2511
    %v2524 = vpop.permute.xlu0 %2523
    %v2526 = vsel %vm2515, %v2519, %v2524
    %vm2527 = vcmask 15360
    %2528 = vst.msk [vmem:[%s15] sm:$0xff] %vm2527, %v2526
    // Predicated region
    $region90: #{tpu_custom_call.1} parent=1 // pred_check
      _
    $region91: #{tpu_custom_call.1} parent=1 // pred_check_branch
      %2530 = sbr.rel (0) target = $region93
    $region92: #{tpu_custom_call.1} parent=1 // pred_region
      _
    $region93: #{tpu_custom_call.1} parent=1 // pred_fallthru
      _
    // Predicated region
    $region94: #{tpu_custom_call.1} parent=1 // pred_check
      _
    $region95: #{tpu_custom_call.1} parent=1 // pred_check_branch
      %2532 = sbr.rel (0) target = $region97
    $region96: #{tpu_custom_call.1} parent=1 // pred_region
      _
    $region97: #{tpu_custom_call.1} parent=1 // pred_fallthru
      _
    %2533 = vsyncpa [#allocation4], 1
    %2534 = vsyncpa [#allocation6], 1
    %2535 = vsyncpa [#allocation9], 1
    %2536 = vsyncpa [#allocation12], 1

</llo_original>
